<compile_context>
chip_gen: v6e
topology: v6e:2x2x1
jax: 0.10.0
libtpu: 0.0.40
codegen_flags: <defaults>
</compile_context>

<pallas_src>
import functools

import jax
import jax.numpy as jnp
from jax import lax
from jax.experimental import pallas as pl
from jax.experimental.pallas import tpu as pltpu


# ----------------------------------------------------------------------------
# Kernel
# ----------------------------------------------------------------------------
def _msrb_kernel(x_ref, hidx_ref, widx_ref,
                 w1_ref, b1_ref,       # stage-1 fused 3x3 convs (block-diag)
                 wf1_ref, bf1_ref,     # fuse1 1x1
                 w2_ref, b2_ref,       # stage-2 fused 3x3 convs (block-diag)
                 wcf_ref, bcf_ref,     # confusion 1x1
                 out_ref,
                 col_scr,              # (18*C, H*W) bf16 im2col scratch
                 *, H, W, C):
    """One batch element per grid step.  x_ref block: (1, C, H*W) float32."""
    HW = H * W

    x = x_ref[0]                       # (C, HW) f32
    h_idx = hidx_ref[...]              # (C, HW) int32, h coordinate of each lane
    w_idx = widx_ref[...]              # (C, HW) int32, w coordinate of each lane

    # Tap order: dilation-1 group then dilation-2 group, kh-major / kw-minor.
    # MUST match the block-diagonal weight packing in the wrapper.
    taps_meta = []
    for dil in (1, 2):
        for kh in range(3):
            for kw in range(3):
                taps_meta.append(((kh - 1) * dil, (kw - 1) * dil))

    def make_tap(src, dh, dw):
        # tap[c, p] = src[c, p + dh*W + dw] if (h+dh, w+dw) is inside the image,
        # else 0 (this reproduces the conv's zero padding).  The shift is a lane
        # rotation (XLU), the border handling a couple of compares + one select.
        s = dh * W + dw
        t = src if s == 0 else pltpu.roll(src, shift=(-s) % HW, axis=1)
        conds = []
        if dh > 0:
            conds.append(h_idx < H - dh)
        elif dh < 0:
            conds.append(h_idx >= -dh)
        if dw > 0:
            conds.append(w_idx < W - dw)
        elif dw < 0:
            conds.append(w_idx >= -dw)
        if conds:
            m = conds[0]
            for cond in conds[1:]:
                m = jnp.logical_and(m, cond)
            t = jnp.where(m, t, jnp.zeros_like(t))
        return t

    def build_col(src_f32):
        # Write taps two at a time: 2C rows per store -> full bf16 sublane tiles
        # (for C = 8: (16, 256) per store), full-lane unmasked stores.
        for i in range(0, 18, 2):
            dh0, dw0 = taps_meta[i]
            dh1, dw1 = taps_meta[i + 1]
            pair = jnp.concatenate([make_tap(src_f32, dh0, dw0),
                                    make_tap(src_f32, dh1, dw1)], axis=0)
            col_scr[i * C:(i + 2) * C, :] = pair.astype(col_scr.dtype)

    def stage(src_f32, w_conv_ref, b_conv_ref, w_fuse_ref, b_fuse_ref):
        build_col(src_f32)
        # Both 3x3 convs of the stage in one MXU matmul; rows [0:C] of the
        # result are the dil=1 conv, rows [C:2C] the dil=2 conv — i.e. the
        # torch.cat(dim=1) the module performs.
        o = jnp.dot(w_conv_ref[...], col_scr[...],
                    preferred_element_type=jnp.float32) + b_conv_ref[...]   # (2C, HW)
        o = jnp.maximum(o, 0.0).astype(jnp.bfloat16)                        # ReLU
        # 1x1 conv over the concatenated channels.
        return jnp.dot(w_fuse_ref[...], o,
                       preferred_element_type=jnp.float32) + b_fuse_ref[...]  # (C, HW)

    in2 = stage(x, w1_ref, b1_ref, wf1_ref, bf1_ref)          # f32 (C, HW)
    out = stage(in2, w2_ref, b2_ref, wcf_ref, bcf_ref)        # f32 (C, HW)

    # residual add in f32, lane-dense store
    out_ref[0] = (out + x).astype(out_ref.dtype)


# ----------------------------------------------------------------------------
# Wrapper: layout handling, weight packing, pallas_call plumbing
# ----------------------------------------------------------------------------
def msrb_forward(x_nchw, params):
    B, C, H, W = x_nchw.shape
    HW = H * W
    x_flat = x_nchw.reshape(B, C, HW).astype(jnp.float32)   # NCHW is already the layout

    def pack3x3(w_hwio):
        # HWIO (3, 3, Cin, Cout) -> (Cout, 9*Cin), columns tap-major (kh, kw) then ci
        return jnp.transpose(w_hwio, (3, 0, 1, 2)).reshape(C, 9 * C)

    def combine(w3, w5):
        a = pack3x3(w3)
        b = pack3x3(w5)
        z = jnp.zeros_like(a)
        top = jnp.concatenate([a, z], axis=1)                 # rows 0..C-1  : dil=1 conv
        bot = jnp.concatenate([z, b], axis=1)                 # rows C..2C-1 : dil=2 conv
        return jnp.concatenate([top, bot], axis=0).astype(jnp.bfloat16)   # (2C, 18C)

    w1 = combine(params["w31"], params["w51"])
    b1 = jnp.concatenate([params["b31"], params["b51"]], axis=1).reshape(2 * C, 1)
    w2 = combine(params["w32"], params["w52"])
    b2 = jnp.concatenate([params["b32"], params["b52"]], axis=1).reshape(2 * C, 1)
    wf1 = params["wf1"].T.astype(jnp.bfloat16)                # (C, 2C)  [out, in]
    bf1 = params["bf1"].reshape(C, 1)
    wcf = params["wcf"].T.astype(jnp.bfloat16)
    bcf = params["bcf"].reshape(C, 1)

    # Spatial coordinate maps (computed once, reused by every tap / both stages).
    h_idx = jnp.broadcast_to((jnp.arange(HW, dtype=jnp.int32) // W)[None, :], (C, HW))
    w_idx = jnp.broadcast_to((jnp.arange(HW, dtype=jnp.int32) % W)[None, :], (C, HW))

    inv = lambda shape: pl.BlockSpec(shape, lambda b: (0,) * len(shape))
    kernel = functools.partial(_msrb_kernel, H=H, W=W, C=C)

    out_flat = pl.pallas_call(
        kernel,
        out_shape=jax.ShapeDtypeStruct((B, C, HW), jnp.float32),
        grid_spec=pltpu.PrefetchScalarGridSpec(
            num_scalar_prefetch=0,
            grid=(B,),
            in_specs=[
                pl.BlockSpec((1, C, HW), lambda b: (b, 0, 0)),   # x (C on sublanes, HW on lanes)
                inv((C, HW)), inv((C, HW)),                      # h_idx, w_idx
                inv((2 * C, 18 * C)), inv((2 * C, 1)),           # stage-1 fused 3x3 convs
                inv((C, 2 * C)),      inv((C, 1)),               # fuse1 (1x1)
                inv((2 * C, 18 * C)), inv((2 * C, 1)),           # stage-2 fused 3x3 convs
                inv((C, 2 * C)),      inv((C, 1)),               # confusion (1x1)
            ],
            out_specs=pl.BlockSpec((1, C, HW), lambda b: (b, 0, 0)),
            scratch_shapes=[
                pltpu.VMEM((18 * C, HW), jnp.bfloat16),          # im2col, bf16 MXU operand
            ],
        ),
        compiler_params=pltpu.CompilerParams(
            dimension_semantics=("parallel",),
            vmem_limit_bytes=32 * 1024 * 1024,
        ),
    )(x_flat, h_idx, w_idx, w1, b1, wf1, bf1, w2, b2, wcf, bcf)

    return out_flat.reshape(B, C, H, W)  # back to NCHW


# ----------------------------------------------------------------------------
# Deterministic synthetic parameters (3x3 weights stored as HWIO, 1x1 as [Cin, Cout])
# ----------------------------------------------------------------------------
def init_params(key, n_feats):
    ks = jax.random.split(key, 12)
    C = n_feats

    def w(k, shape, scale):
        return scale * jax.random.normal(k, shape, jnp.float32)

    return {
        "w31": w(ks[0], (3, 3, C, C), 0.1),   "b31": w(ks[1], (1, C), 0.05),
        "w51": w(ks[2], (3, 3, C, C), 0.1),   "b51": w(ks[3], (1, C), 0.05),
        "wf1": w(ks[4], (2 * C, C), 0.1),     "bf1": w(ks[5], (1, C), 0.05),
        "w32": w(ks[6], (3, 3, C, C), 0.1),   "b32": w(ks[7], (1, C), 0.05),
        "w52": w(ks[8], (3, 3, C, C), 0.1),   "b52": w(ks[9], (1, C), 0.05),
        "wcf": w(ks[10], (2 * C, C), 0.1),    "bcf": w(ks[11], (1, C), 0.05),
    }


# ----------------------------------------------------------------------------
# Pure-JAX float32 reference (mirrors the PyTorch forward exactly)
# ----------------------------------------------------------------------------
def msrb_reference(x_nchw, params):
    x = jnp.transpose(x_nchw, (0, 2, 3, 1)).astype(jnp.float32)  # NHWC

    def conv(inp, w, b, dil):
        out = lax.conv_general_dilated(
            inp, w, window_strides=(1, 1),
            padding=[(dil, dil), (dil, dil)],
            rhs_dilation=(dil, dil),
            dimension_numbers=("NHWC", "HWIO", "NHWC"))
        return out + b.reshape(1, 1, 1, -1)

    def conv1x1(inp, w, b):
        return jnp.einsum("bhwc,cd->bhwd", inp, w) + b.reshape(1, 1, 1, -1)

    o31 = conv(x, params["w31"], params["b31"], 1)
    o51 = conv(x, params["w51"], params["b51"], 2)
    in2 = jax.nn.relu(jnp.concatenate([o31, o51], axis=-1))
    in2 = conv1x1(in2, params["wf1"], params["bf1"])
    o32 = conv(in2, params["w32"], params["b32"], 1)
    o52 = conv(in2, params["w52"], params["b52"], 2)
    in3 = jax.nn.relu(jnp.concatenate([o32, o52], axis=-1))
    out = conv1x1(in3, params["wcf"], params["bcf"]) + x
    return jnp.transpose(out, (0, 3, 1, 2))  # NCHW


if __name__ == "__main__":
    key = jax.random.PRNGKey(0)
    k_x, k_p = jax.random.split(key)

    B, n_feats, H, W = 2, 8, 16, 16
    x = jax.random.normal(k_x, (B, n_feats, H, W), jnp.float32)   # NCHW like PyTorch
    params = init_params(k_p, n_feats)

    out = msrb_forward(x, params)
    out = jax.block_until_ready(out)

    ref = msrb_reference(x, params)
    assert out.shape == x.shape, (out.shape, x.shape)
    # bf16 MXU operands with f32 accumulation across two chained conv stages:
    # allow ~1e-2-level absolute error vs. the f32 reference.
    max_err = float(jnp.max(jnp.abs(out - ref)))
    assert max_err < 5e-2, f"max abs error too large: {max_err}"

    print("KERNEL_OK")
</pallas_src>

<mosaic_0001>
module attributes {stable_mosaic.version = 11 : i64} {
  func.func @_msrb_kernel(%arg0: i32, %arg1: memref<1x8x256xf32, #tpu.memory_space<vmem>>, %arg2: memref<8x256xi32, #tpu.memory_space<vmem>>, %arg3: memref<8x256xi32, #tpu.memory_space<vmem>>, %arg4: memref<16x144xbf16, #tpu.memory_space<vmem>>, %arg5: memref<16x1xf32, #tpu.memory_space<vmem>>, %arg6: memref<8x16xbf16, #tpu.memory_space<vmem>>, %arg7: memref<8x1xf32, #tpu.memory_space<vmem>>, %arg8: memref<16x144xbf16, #tpu.memory_space<vmem>>, %arg9: memref<16x1xf32, #tpu.memory_space<vmem>>, %arg10: memref<8x16xbf16, #tpu.memory_space<vmem>>, %arg11: memref<8x1xf32, #tpu.memory_space<vmem>>, %arg12: memref<1x8x256xf32, #tpu.memory_space<vmem>>, %arg13: memref<144x256xbf16, #tpu.memory_space<vmem>>) attributes {dimension_semantics = [#tpu.dimension_semantics<parallel>], iteration_bounds = array<i64: 2>, scalar_prefetch = 0 : i64, scratch_operands = 1 : i64, tpu.core_type = #tpu.core_type<tc>, window_params = [{transform_indices = @transform_0, window_bounds = array<i64: 1, 8, 256>}, {pipeline_mode = #tpu.pipeline_mode<synchronous>, transform_indices = @transform_1, window_bounds = array<i64: 8, 256>}, {pipeline_mode = #tpu.pipeline_mode<synchronous>, transform_indices = @transform_2, window_bounds = array<i64: 8, 256>}, {pipeline_mode = #tpu.pipeline_mode<synchronous>, transform_indices = @transform_3, window_bounds = array<i64: 16, 144>}, {pipeline_mode = #tpu.pipeline_mode<synchronous>, transform_indices = @transform_4, window_bounds = array<i64: 16, 1>}, {pipeline_mode = #tpu.pipeline_mode<synchronous>, transform_indices = @transform_5, window_bounds = array<i64: 8, 16>}, {pipeline_mode = #tpu.pipeline_mode<synchronous>, transform_indices = @transform_6, window_bounds = array<i64: 8, 1>}, {pipeline_mode = #tpu.pipeline_mode<synchronous>, transform_indices = @transform_7, window_bounds = array<i64: 16, 144>}, {pipeline_mode = #tpu.pipeline_mode<synchronous>, transform_indices = @transform_8, window_bounds = array<i64: 16, 1>}, {pipeline_mode = #tpu.pipeline_mode<synchronous>, transform_indices = @transform_9, window_bounds = array<i64: 8, 16>}, {pipeline_mode = #tpu.pipeline_mode<synchronous>, transform_indices = @transform_10, window_bounds = array<i64: 8, 1>}, {transform_indices = @transform_11, window_bounds = array<i64: 1, 8, 256>}]} {
    %c0 = arith.constant 0 : index
    %c0_0 = arith.constant 0 : index
    %c0_1 = arith.constant 0 : index
    %0 = vector.load %arg1[%c0, %c0_0, %c0_1] : memref<1x8x256xf32, #tpu.memory_space<vmem>>, vector<1x8x256xf32>
    %1 = vector.shape_cast %0 : vector<1x8x256xf32> to vector<8x256xf32>
    %c0_2 = arith.constant 0 : index
    %c0_3 = arith.constant 0 : index
    %2 = vector.load %arg2[%c0_2, %c0_3] : memref<8x256xi32, #tpu.memory_space<vmem>>, vector<8x256xi32>
    %c0_4 = arith.constant 0 : index
    %c0_5 = arith.constant 0 : index
    %3 = vector.load %arg3[%c0_4, %c0_5] : memref<8x256xi32, #tpu.memory_space<vmem>>, vector<8x256xi32>
    %c17_i32 = arith.constant 17 : i32
    %4 = tpu.dynamic_rotate %1 by %c17_i32 dim 1 : vector<8x256xf32>, i32 -> vector<8x256xf32>
    %c1_i32 = arith.constant 1 : i32
    %5 = vector.broadcast %c1_i32 : i32 to vector<8x256xi32>
    %6 = arith.cmpi sge, %2, %5 : vector<8x256xi32>
    %c1_i32_6 = arith.constant 1 : i32
    %7 = vector.broadcast %c1_i32_6 : i32 to vector<8x256xi32>
    %8 = arith.cmpi sge, %3, %7 : vector<8x256xi32>
    %9 = arith.andi %6, %8 : vector<8x256xi1>
    %cst = arith.constant 0.000000e+00 : f32
    %10 = vector.broadcast %cst : f32 to vector<8x256xf32>
    %11 = arith.select %9, %4, %10 : vector<8x256xi1>, vector<8x256xf32>
    %c16_i32 = arith.constant 16 : i32
    %12 = tpu.dynamic_rotate %1 by %c16_i32 dim 1 : vector<8x256xf32>, i32 -> vector<8x256xf32>
    %c1_i32_7 = arith.constant 1 : i32
    %13 = vector.broadcast %c1_i32_7 : i32 to vector<8x256xi32>
    %14 = arith.cmpi sge, %2, %13 : vector<8x256xi32>
    %cst_8 = arith.constant 0.000000e+00 : f32
    %15 = vector.broadcast %cst_8 : f32 to vector<8x256xf32>
    %16 = arith.select %14, %12, %15 : vector<8x256xi1>, vector<8x256xf32>
    %17 = tpu.concatenate %11, %16 in 0 : vector<8x256xf32>, vector<8x256xf32> -> vector<16x256xf32>
    %18 = arith.truncf %17 : vector<16x256xf32> to vector<16x256xbf16>
    %c0_9 = arith.constant 0 : index
    %c0_10 = arith.constant 0 : index
    %19 = vector.load %arg13[%c0_9, %c0_10] : memref<144x256xbf16, #tpu.memory_space<vmem>>, vector<16x256xbf16>
    tpu.vector_store %arg13[%c0_9, %c0_10], %18 {strides = array<i32>} : memref<144x256xbf16, #tpu.memory_space<vmem>>, vector<16x256xbf16>,
    %c15_i32 = arith.constant 15 : i32
    %20 = tpu.dynamic_rotate %1 by %c15_i32 dim 1 : vector<8x256xf32>, i32 -> vector<8x256xf32>
    %c1_i32_11 = arith.constant 1 : i32
    %21 = vector.broadcast %c1_i32_11 : i32 to vector<8x256xi32>
    %22 = arith.cmpi sge, %2, %21 : vector<8x256xi32>
    %c15_i32_12 = arith.constant 15 : i32
    %23 = vector.broadcast %c15_i32_12 : i32 to vector<8x256xi32>
    %24 = arith.cmpi slt, %3, %23 : vector<8x256xi32>
    %25 = arith.andi %22, %24 : vector<8x256xi1>
    %cst_13 = arith.constant 0.000000e+00 : f32
    %26 = vector.broadcast %cst_13 : f32 to vector<8x256xf32>
    %27 = arith.select %25, %20, %26 : vector<8x256xi1>, vector<8x256xf32>
    %c1_i32_14 = arith.constant 1 : i32
    %28 = tpu.dynamic_rotate %1 by %c1_i32_14 dim 1 : vector<8x256xf32>, i32 -> vector<8x256xf32>
    %c1_i32_15 = arith.constant 1 : i32
    %29 = vector.broadcast %c1_i32_15 : i32 to vector<8x256xi32>
    %30 = arith.cmpi sge, %3, %29 : vector<8x256xi32>
    %cst_16 = arith.constant 0.000000e+00 : f32
    %31 = vector.broadcast %cst_16 : f32 to vector<8x256xf32>
    %32 = arith.select %30, %28, %31 : vector<8x256xi1>, vector<8x256xf32>
    %33 = tpu.concatenate %27, %32 in 0 : vector<8x256xf32>, vector<8x256xf32> -> vector<16x256xf32>
    %34 = arith.truncf %33 : vector<16x256xf32> to vector<16x256xbf16>
    %c16 = arith.constant 16 : index
    %c0_17 = arith.constant 0 : index
    %35 = vector.load %arg13[%c16, %c0_17] : memref<144x256xbf16, #tpu.memory_space<vmem>>, vector<16x256xbf16>
    tpu.vector_store %arg13[%c16, %c0_17], %34 {strides = array<i32>} : memref<144x256xbf16, #tpu.memory_space<vmem>>, vector<16x256xbf16>,
    %c255_i32 = arith.constant 255 : i32
    %36 = tpu.dynamic_rotate %1 by %c255_i32 dim 1 : vector<8x256xf32>, i32 -> vector<8x256xf32>
    %c15_i32_18 = arith.constant 15 : i32
    %37 = vector.broadcast %c15_i32_18 : i32 to vector<8x256xi32>
    %38 = arith.cmpi slt, %3, %37 : vector<8x256xi32>
    %cst_19 = arith.constant 0.000000e+00 : f32
    %39 = vector.broadcast %cst_19 : f32 to vector<8x256xf32>
    %40 = arith.select %38, %36, %39 : vector<8x256xi1>, vector<8x256xf32>
    %41 = tpu.concatenate %1, %40 in 0 : vector<8x256xf32>, vector<8x256xf32> -> vector<16x256xf32>
    %42 = arith.truncf %41 : vector<16x256xf32> to vector<16x256xbf16>
    %c32 = arith.constant 32 : index
    %c0_20 = arith.constant 0 : index
    %43 = vector.load %arg13[%c32, %c0_20] : memref<144x256xbf16, #tpu.memory_space<vmem>>, vector<16x256xbf16>
    tpu.vector_store %arg13[%c32, %c0_20], %42 {strides = array<i32>} : memref<144x256xbf16, #tpu.memory_space<vmem>>, vector<16x256xbf16>,
    %c241_i32 = arith.constant 241 : i32
    %44 = tpu.dynamic_rotate %1 by %c241_i32 dim 1 : vector<8x256xf32>, i32 -> vector<8x256xf32>
    %c15_i32_21 = arith.constant 15 : i32
    %45 = vector.broadcast %c15_i32_21 : i32 to vector<8x256xi32>
    %46 = arith.cmpi slt, %2, %45 : vector<8x256xi32>
    %c1_i32_22 = arith.constant 1 : i32
    %47 = vector.broadcast %c1_i32_22 : i32 to vector<8x256xi32>
    %48 = arith.cmpi sge, %3, %47 : vector<8x256xi32>
    %49 = arith.andi %46, %48 : vector<8x256xi1>
    %cst_23 = arith.constant 0.000000e+00 : f32
    %50 = vector.broadcast %cst_23 : f32 to vector<8x256xf32>
    %51 = arith.select %49, %44, %50 : vector<8x256xi1>, vector<8x256xf32>
    %c240_i32 = arith.constant 240 : i32
    %52 = tpu.dynamic_rotate %1 by %c240_i32 dim 1 : vector<8x256xf32>, i32 -> vector<8x256xf32>
    %c15_i32_24 = arith.constant 15 : i32
    %53 = vector.broadcast %c15_i32_24 : i32 to vector<8x256xi32>
    %54 = arith.cmpi slt, %2, %53 : vector<8x256xi32>
    %cst_25 = arith.constant 0.000000e+00 : f32
    %55 = vector.broadcast %cst_25 : f32 to vector<8x256xf32>
    %56 = arith.select %54, %52, %55 : vector<8x256xi1>, vector<8x256xf32>
    %57 = tpu.concatenate %51, %56 in 0 : vector<8x256xf32>, vector<8x256xf32> -> vector<16x256xf32>
    %58 = arith.truncf %57 : vector<16x256xf32> to vector<16x256xbf16>
    %c48 = arith.constant 48 : index
    %c0_26 = arith.constant 0 : index
    %59 = vector.load %arg13[%c48, %c0_26] : memref<144x256xbf16, #tpu.memory_space<vmem>>, vector<16x256xbf16>
    tpu.vector_store %arg13[%c48, %c0_26], %58 {strides = array<i32>} : memref<144x256xbf16, #tpu.memory_space<vmem>>, vector<16x256xbf16>,
    %c239_i32 = arith.constant 239 : i32
    %60 = tpu.dynamic_rotate %1 by %c239_i32 dim 1 : vector<8x256xf32>, i32 -> vector<8x256xf32>
    %c15_i32_27 = arith.constant 15 : i32
    %61 = vector.broadcast %c15_i32_27 : i32 to vector<8x256xi32>
    %62 = arith.cmpi slt, %2, %61 : vector<8x256xi32>
    %c15_i32_28 = arith.constant 15 : i32
    %63 = vector.broadcast %c15_i32_28 : i32 to vector<8x256xi32>
    %64 = arith.cmpi slt, %3, %63 : vector<8x256xi32>
    %65 = arith.andi %62, %64 : vector<8x256xi1>
    %cst_29 = arith.constant 0.000000e+00 : f32
    %66 = vector.broadcast %cst_29 : f32 to vector<8x256xf32>
    %67 = arith.select %65, %60, %66 : vector<8x256xi1>, vector<8x256xf32>
    %c34_i32 = arith.constant 34 : i32
    %68 = tpu.dynamic_rotate %1 by %c34_i32 dim 1 : vector<8x256xf32>, i32 -> vector<8x256xf32>
    %c2_i32 = arith.constant 2 : i32
    %69 = vector.broadcast %c2_i32 : i32 to vector<8x256xi32>
    %70 = arith.cmpi sge, %2, %69 : vector<8x256xi32>
    %c2_i32_30 = arith.constant 2 : i32
    %71 = vector.broadcast %c2_i32_30 : i32 to vector<8x256xi32>
    %72 = arith.cmpi sge, %3, %71 : vector<8x256xi32>
    %73 = arith.andi %70, %72 : vector<8x256xi1>
    %cst_31 = arith.constant 0.000000e+00 : f32
    %74 = vector.broadcast %cst_31 : f32 to vector<8x256xf32>
    %75 = arith.select %73, %68, %74 : vector<8x256xi1>, vector<8x256xf32>
    %76 = tpu.concatenate %67, %75 in 0 : vector<8x256xf32>, vector<8x256xf32> -> vector<16x256xf32>
    %77 = arith.truncf %76 : vector<16x256xf32> to vector<16x256xbf16>
    %c64 = arith.constant 64 : index
    %c0_32 = arith.constant 0 : index
    %78 = vector.load %arg13[%c64, %c0_32] : memref<144x256xbf16, #tpu.memory_space<vmem>>, vector<16x256xbf16>
    tpu.vector_store %arg13[%c64, %c0_32], %77 {strides = array<i32>} : memref<144x256xbf16, #tpu.memory_space<vmem>>, vector<16x256xbf16>,
    %c32_i32 = arith.constant 32 : i32
    %79 = tpu.dynamic_rotate %1 by %c32_i32 dim 1 : vector<8x256xf32>, i32 -> vector<8x256xf32>
    %c2_i32_33 = arith.constant 2 : i32
    %80 = vector.broadcast %c2_i32_33 : i32 to vector<8x256xi32>
    %81 = arith.cmpi sge, %2, %80 : vector<8x256xi32>
    %cst_34 = arith.constant 0.000000e+00 : f32
    %82 = vector.broadcast %cst_34 : f32 to vector<8x256xf32>
    %83 = arith.select %81, %79, %82 : vector<8x256xi1>, vector<8x256xf32>
    %c30_i32 = arith.constant 30 : i32
    %84 = tpu.dynamic_rotate %1 by %c30_i32 dim 1 : vector<8x256xf32>, i32 -> vector<8x256xf32>
    %c2_i32_35 = arith.constant 2 : i32
    %85 = vector.broadcast %c2_i32_35 : i32 to vector<8x256xi32>
    %86 = arith.cmpi sge, %2, %85 : vector<8x256xi32>
    %c14_i32 = arith.constant 14 : i32
    %87 = vector.broadcast %c14_i32 : i32 to vector<8x256xi32>
    %88 = arith.cmpi slt, %3, %87 : vector<8x256xi32>
    %89 = arith.andi %86, %88 : vector<8x256xi1>
    %cst_36 = arith.constant 0.000000e+00 : f32
    %90 = vector.broadcast %cst_36 : f32 to vector<8x256xf32>
    %91 = arith.select %89, %84, %90 : vector<8x256xi1>, vector<8x256xf32>
    %92 = tpu.concatenate %83, %91 in 0 : vector<8x256xf32>, vector<8x256xf32> -> vector<16x256xf32>
    %93 = arith.truncf %92 : vector<16x256xf32> to vector<16x256xbf16>
    %c80 = arith.constant 80 : index
    %c0_37 = arith.constant 0 : index
    %94 = vector.load %arg13[%c80, %c0_37] : memref<144x256xbf16, #tpu.memory_space<vmem>>, vector<16x256xbf16>
    tpu.vector_store %arg13[%c80, %c0_37], %93 {strides = array<i32>} : memref<144x256xbf16, #tpu.memory_space<vmem>>, vector<16x256xbf16>,
    %c2_i32_38 = arith.constant 2 : i32
    %95 = tpu.dynamic_rotate %1 by %c2_i32_38 dim 1 : vector<8x256xf32>, i32 -> vector<8x256xf32>
    %c2_i32_39 = arith.constant 2 : i32
    %96 = vector.broadcast %c2_i32_39 : i32 to vector<8x256xi32>
    %97 = arith.cmpi sge, %3, %96 : vector<8x256xi32>
    %cst_40 = arith.constant 0.000000e+00 : f32
    %98 = vector.broadcast %cst_40 : f32 to vector<8x256xf32>
    %99 = arith.select %97, %95, %98 : vector<8x256xi1>, vector<8x256xf32>
    %100 = tpu.concatenate %99, %1 in 0 : vector<8x256xf32>, vector<8x256xf32> -> vector<16x256xf32>
    %101 = arith.truncf %100 : vector<16x256xf32> to vector<16x256xbf16>
    %c96 = arith.constant 96 : index
    %c0_41 = arith.constant 0 : index
    %102 = vector.load %arg13[%c96, %c0_41] : memref<144x256xbf16, #tpu.memory_space<vmem>>, vector<16x256xbf16>
    tpu.vector_store %arg13[%c96, %c0_41], %101 {strides = array<i32>} : memref<144x256xbf16, #tpu.memory_space<vmem>>, vector<16x256xbf16>,
    %c254_i32 = arith.constant 254 : i32
    %103 = tpu.dynamic_rotate %1 by %c254_i32 dim 1 : vector<8x256xf32>, i32 -> vector<8x256xf32>
    %c14_i32_42 = arith.constant 14 : i32
    %104 = vector.broadcast %c14_i32_42 : i32 to vector<8x256xi32>
    %105 = arith.cmpi slt, %3, %104 : vector<8x256xi32>
    %cst_43 = arith.constant 0.000000e+00 : f32
    %106 = vector.broadcast %cst_43 : f32 to vector<8x256xf32>
    %107 = arith.select %105, %103, %106 : vector<8x256xi1>, vector<8x256xf32>
    %c226_i32 = arith.constant 226 : i32
    %108 = tpu.dynamic_rotate %1 by %c226_i32 dim 1 : vector<8x256xf32>, i32 -> vector<8x256xf32>
    %c14_i32_44 = arith.constant 14 : i32
    %109 = vector.broadcast %c14_i32_44 : i32 to vector<8x256xi32>
    %110 = arith.cmpi slt, %2, %109 : vector<8x256xi32>
    %c2_i32_45 = arith.constant 2 : i32
    %111 = vector.broadcast %c2_i32_45 : i32 to vector<8x256xi32>
    %112 = arith.cmpi sge, %3, %111 : vector<8x256xi32>
    %113 = arith.andi %110, %112 : vector<8x256xi1>
    %cst_46 = arith.constant 0.000000e+00 : f32
    %114 = vector.broadcast %cst_46 : f32 to vector<8x256xf32>
    %115 = arith.select %113, %108, %114 : vector<8x256xi1>, vector<8x256xf32>
    %116 = tpu.concatenate %107, %115 in 0 : vector<8x256xf32>, vector<8x256xf32> -> vector<16x256xf32>
    %117 = arith.truncf %116 : vector<16x256xf32> to vector<16x256xbf16>
    %c112 = arith.constant 112 : index
    %c0_47 = arith.constant 0 : index
    %118 = vector.load %arg13[%c112, %c0_47] : memref<144x256xbf16, #tpu.memory_space<vmem>>, vector<16x256xbf16>
    tpu.vector_store %arg13[%c112, %c0_47], %117 {strides = array<i32>} : memref<144x256xbf16, #tpu.memory_space<vmem>>, vector<16x256xbf16>,
    %c224_i32 = arith.constant 224 : i32
    %119 = tpu.dynamic_rotate %1 by %c224_i32 dim 1 : vector<8x256xf32>, i32 -> vector<8x256xf32>
    %c14_i32_48 = arith.constant 14 : i32
    %120 = vector.broadcast %c14_i32_48 : i32 to vector<8x256xi32>
    %121 = arith.cmpi slt, %2, %120 : vector<8x256xi32>
    %cst_49 = arith.constant 0.000000e+00 : f32
    %122 = vector.broadcast %cst_49 : f32 to vector<8x256xf32>
    %123 = arith.select %121, %119, %122 : vector<8x256xi1>, vector<8x256xf32>
    %c222_i32 = arith.constant 222 : i32
    %124 = tpu.dynamic_rotate %1 by %c222_i32 dim 1 : vector<8x256xf32>, i32 -> vector<8x256xf32>
    %c14_i32_50 = arith.constant 14 : i32
    %125 = vector.broadcast %c14_i32_50 : i32 to vector<8x256xi32>
    %126 = arith.cmpi slt, %2, %125 : vector<8x256xi32>
    %c14_i32_51 = arith.constant 14 : i32
    %127 = vector.broadcast %c14_i32_51 : i32 to vector<8x256xi32>
    %128 = arith.cmpi slt, %3, %127 : vector<8x256xi32>
    %129 = arith.andi %126, %128 : vector<8x256xi1>
    %cst_52 = arith.constant 0.000000e+00 : f32
    %130 = vector.broadcast %cst_52 : f32 to vector<8x256xf32>
    %131 = arith.select %129, %124, %130 : vector<8x256xi1>, vector<8x256xf32>
    %132 = tpu.concatenate %123, %131 in 0 : vector<8x256xf32>, vector<8x256xf32> -> vector<16x256xf32>
    %133 = arith.truncf %132 : vector<16x256xf32> to vector<16x256xbf16>
    %c128 = arith.constant 128 : index
    %c0_53 = arith.constant 0 : index
    %134 = vector.load %arg13[%c128, %c0_53] : memref<144x256xbf16, #tpu.memory_space<vmem>>, vector<16x256xbf16>
    tpu.vector_store %arg13[%c128, %c0_53], %133 {strides = array<i32>} : memref<144x256xbf16, #tpu.memory_space<vmem>>, vector<16x256xbf16>,
    %c0_54 = arith.constant 0 : index
    %c0_55 = arith.constant 0 : index
    %135 = vector.load %arg4[%c0_54, %c0_55] : memref<16x144xbf16, #tpu.memory_space<vmem>>, vector<16x144xbf16>
    %c0_56 = arith.constant 0 : index
    %c0_57 = arith.constant 0 : index
    %136 = vector.load %arg13[%c0_56, %c0_57] : memref<144x256xbf16, #tpu.memory_space<vmem>>, vector<144x256xbf16>
    %cst_58 = arith.constant dense<0.000000e+00> : vector<16x256xf32>
    %137 = tpu.matmul %135, %136, %cst_58 {dimension_numbers = #tpu.dot_dimension_numbers<[1], [0], [0], [1], [0, 0, 1, 1], [], []>} : vector<16x144xbf16>, vector<144x256xbf16>, vector<16x256xf32> -> vector<16x256xf32>
    %c0_59 = arith.constant 0 : index
    %c0_60 = arith.constant 0 : index
    %138 = vector.load %arg5[%c0_59, %c0_60] : memref<16x1xf32, #tpu.memory_space<vmem>>, vector<16x1xf32>
    %139 = vector.broadcast %138 : vector<16x1xf32> to vector<16x256xf32>
    %140 = arith.addf %137, %139 : vector<16x256xf32>
    %cst_61 = arith.constant 0.000000e+00 : f32
    %141 = vector.broadcast %cst_61 : f32 to vector<16x256xf32>
    %142 = arith.maximumf %140, %141 : vector<16x256xf32>
    %143 = arith.truncf %142 : vector<16x256xf32> to vector<16x256xbf16>
    %c0_62 = arith.constant 0 : index
    %c0_63 = arith.constant 0 : index
    %144 = vector.load %arg6[%c0_62, %c0_63] : memref<8x16xbf16, #tpu.memory_space<vmem>>, vector<8x16xbf16>
    %cst_64 = arith.constant dense<0.000000e+00> : vector<8x256xf32>
    %145 = tpu.matmul %144, %143, %cst_64 {dimension_numbers = #tpu.dot_dimension_numbers<[1], [0], [0], [1], [0, 0, 1, 1], [], []>} : vector<8x16xbf16>, vector<16x256xbf16>, vector<8x256xf32> -> vector<8x256xf32>
    %c0_65 = arith.constant 0 : index
    %c0_66 = arith.constant 0 : index
    %146 = vector.load %arg7[%c0_65, %c0_66] : memref<8x1xf32, #tpu.memory_space<vmem>>, vector<8x1xf32>
    %147 = vector.broadcast %146 : vector<8x1xf32> to vector<8x256xf32>
    %148 = arith.addf %145, %147 : vector<8x256xf32>
    %c17_i32_67 = arith.constant 17 : i32
    %149 = tpu.dynamic_rotate %148 by %c17_i32_67 dim 1 : vector<8x256xf32>, i32 -> vector<8x256xf32>
    %c1_i32_68 = arith.constant 1 : i32
    %150 = vector.broadcast %c1_i32_68 : i32 to vector<8x256xi32>
    %151 = arith.cmpi sge, %2, %150 : vector<8x256xi32>
    %c1_i32_69 = arith.constant 1 : i32
    %152 = vector.broadcast %c1_i32_69 : i32 to vector<8x256xi32>
    %153 = arith.cmpi sge, %3, %152 : vector<8x256xi32>
    %154 = arith.andi %151, %153 : vector<8x256xi1>
    %cst_70 = arith.constant 0.000000e+00 : f32
    %155 = vector.broadcast %cst_70 : f32 to vector<8x256xf32>
    %156 = arith.select %154, %149, %155 : vector<8x256xi1>, vector<8x256xf32>
    %c16_i32_71 = arith.constant 16 : i32
    %157 = tpu.dynamic_rotate %148 by %c16_i32_71 dim 1 : vector<8x256xf32>, i32 -> vector<8x256xf32>
    %c1_i32_72 = arith.constant 1 : i32
    %158 = vector.broadcast %c1_i32_72 : i32 to vector<8x256xi32>
    %159 = arith.cmpi sge, %2, %158 : vector<8x256xi32>
    %cst_73 = arith.constant 0.000000e+00 : f32
    %160 = vector.broadcast %cst_73 : f32 to vector<8x256xf32>
    %161 = arith.select %159, %157, %160 : vector<8x256xi1>, vector<8x256xf32>
    %162 = tpu.concatenate %156, %161 in 0 : vector<8x256xf32>, vector<8x256xf32> -> vector<16x256xf32>
    %163 = arith.truncf %162 : vector<16x256xf32> to vector<16x256xbf16>
    %c0_74 = arith.constant 0 : index
    %c0_75 = arith.constant 0 : index
    %164 = vector.load %arg13[%c0_74, %c0_75] : memref<144x256xbf16, #tpu.memory_space<vmem>>, vector<16x256xbf16>
    tpu.vector_store %arg13[%c0_74, %c0_75], %163 {strides = array<i32>} : memref<144x256xbf16, #tpu.memory_space<vmem>>, vector<16x256xbf16>,
    %c15_i32_76 = arith.constant 15 : i32
    %165 = tpu.dynamic_rotate %148 by %c15_i32_76 dim 1 : vector<8x256xf32>, i32 -> vector<8x256xf32>
    %c1_i32_77 = arith.constant 1 : i32
    %166 = vector.broadcast %c1_i32_77 : i32 to vector<8x256xi32>
    %167 = arith.cmpi sge, %2, %166 : vector<8x256xi32>
    %c15_i32_78 = arith.constant 15 : i32
    %168 = vector.broadcast %c15_i32_78 : i32 to vector<8x256xi32>
    %169 = arith.cmpi slt, %3, %168 : vector<8x256xi32>
    %170 = arith.andi %167, %169 : vector<8x256xi1>
    %cst_79 = arith.constant 0.000000e+00 : f32
    %171 = vector.broadcast %cst_79 : f32 to vector<8x256xf32>
    %172 = arith.select %170, %165, %171 : vector<8x256xi1>, vector<8x256xf32>
    %c1_i32_80 = arith.constant 1 : i32
    %173 = tpu.dynamic_rotate %148 by %c1_i32_80 dim 1 : vector<8x256xf32>, i32 -> vector<8x256xf32>
    %c1_i32_81 = arith.constant 1 : i32
    %174 = vector.broadcast %c1_i32_81 : i32 to vector<8x256xi32>
    %175 = arith.cmpi sge, %3, %174 : vector<8x256xi32>
    %cst_82 = arith.constant 0.000000e+00 : f32
    %176 = vector.broadcast %cst_82 : f32 to vector<8x256xf32>
    %177 = arith.select %175, %173, %176 : vector<8x256xi1>, vector<8x256xf32>
    %178 = tpu.concatenate %172, %177 in 0 : vector<8x256xf32>, vector<8x256xf32> -> vector<16x256xf32>
    %179 = arith.truncf %178 : vector<16x256xf32> to vector<16x256xbf16>
    %c16_83 = arith.constant 16 : index
    %c0_84 = arith.constant 0 : index
    %180 = vector.load %arg13[%c16_83, %c0_84] : memref<144x256xbf16, #tpu.memory_space<vmem>>, vector<16x256xbf16>
    tpu.vector_store %arg13[%c16_83, %c0_84], %179 {strides = array<i32>} : memref<144x256xbf16, #tpu.memory_space<vmem>>, vector<16x256xbf16>,
    %c255_i32_85 = arith.constant 255 : i32
    %181 = tpu.dynamic_rotate %148 by %c255_i32_85 dim 1 : vector<8x256xf32>, i32 -> vector<8x256xf32>
    %c15_i32_86 = arith.constant 15 : i32
    %182 = vector.broadcast %c15_i32_86 : i32 to vector<8x256xi32>
    %183 = arith.cmpi slt, %3, %182 : vector<8x256xi32>
    %cst_87 = arith.constant 0.000000e+00 : f32
    %184 = vector.broadcast %cst_87 : f32 to vector<8x256xf32>
    %185 = arith.select %183, %181, %184 : vector<8x256xi1>, vector<8x256xf32>
    %186 = tpu.concatenate %148, %185 in 0 : vector<8x256xf32>, vector<8x256xf32> -> vector<16x256xf32>
    %187 = arith.truncf %186 : vector<16x256xf32> to vector<16x256xbf16>
    %c32_88 = arith.constant 32 : index
    %c0_89 = arith.constant 0 : index
    %188 = vector.load %arg13[%c32_88, %c0_89] : memref<144x256xbf16, #tpu.memory_space<vmem>>, vector<16x256xbf16>
    tpu.vector_store %arg13[%c32_88, %c0_89], %187 {strides = array<i32>} : memref<144x256xbf16, #tpu.memory_space<vmem>>, vector<16x256xbf16>,
    %c241_i32_90 = arith.constant 241 : i32
    %189 = tpu.dynamic_rotate %148 by %c241_i32_90 dim 1 : vector<8x256xf32>, i32 -> vector<8x256xf32>
    %c15_i32_91 = arith.constant 15 : i32
    %190 = vector.broadcast %c15_i32_91 : i32 to vector<8x256xi32>
    %191 = arith.cmpi slt, %2, %190 : vector<8x256xi32>
    %c1_i32_92 = arith.constant 1 : i32
    %192 = vector.broadcast %c1_i32_92 : i32 to vector<8x256xi32>
    %193 = arith.cmpi sge, %3, %192 : vector<8x256xi32>
    %194 = arith.andi %191, %193 : vector<8x256xi1>
    %cst_93 = arith.constant 0.000000e+00 : f32
    %195 = vector.broadcast %cst_93 : f32 to vector<8x256xf32>
    %196 = arith.select %194, %189, %195 : vector<8x256xi1>, vector<8x256xf32>
    %c240_i32_94 = arith.constant 240 : i32
    %197 = tpu.dynamic_rotate %148 by %c240_i32_94 dim 1 : vector<8x256xf32>, i32 -> vector<8x256xf32>
    %c15_i32_95 = arith.constant 15 : i32
    %198 = vector.broadcast %c15_i32_95 : i32 to vector<8x256xi32>
    %199 = arith.cmpi slt, %2, %198 : vector<8x256xi32>
    %cst_96 = arith.constant 0.000000e+00 : f32
    %200 = vector.broadcast %cst_96 : f32 to vector<8x256xf32>
    %201 = arith.select %199, %197, %200 : vector<8x256xi1>, vector<8x256xf32>
    %202 = tpu.concatenate %196, %201 in 0 : vector<8x256xf32>, vector<8x256xf32> -> vector<16x256xf32>
    %203 = arith.truncf %202 : vector<16x256xf32> to vector<16x256xbf16>
    %c48_97 = arith.constant 48 : index
    %c0_98 = arith.constant 0 : index
    %204 = vector.load %arg13[%c48_97, %c0_98] : memref<144x256xbf16, #tpu.memory_space<vmem>>, vector<16x256xbf16>
    tpu.vector_store %arg13[%c48_97, %c0_98], %203 {strides = array<i32>} : memref<144x256xbf16, #tpu.memory_space<vmem>>, vector<16x256xbf16>,
    %c239_i32_99 = arith.constant 239 : i32
    %205 = tpu.dynamic_rotate %148 by %c239_i32_99 dim 1 : vector<8x256xf32>, i32 -> vector<8x256xf32>
    %c15_i32_100 = arith.constant 15 : i32
    %206 = vector.broadcast %c15_i32_100 : i32 to vector<8x256xi32>
    %207 = arith.cmpi slt, %2, %206 : vector<8x256xi32>
    %c15_i32_101 = arith.constant 15 : i32
    %208 = vector.broadcast %c15_i32_101 : i32 to vector<8x256xi32>
    %209 = arith.cmpi slt, %3, %208 : vector<8x256xi32>
    %210 = arith.andi %207, %209 : vector<8x256xi1>
    %cst_102 = arith.constant 0.000000e+00 : f32
    %211 = vector.broadcast %cst_102 : f32 to vector<8x256xf32>
    %212 = arith.select %210, %205, %211 : vector<8x256xi1>, vector<8x256xf32>
    %c34_i32_103 = arith.constant 34 : i32
    %213 = tpu.dynamic_rotate %148 by %c34_i32_103 dim 1 : vector<8x256xf32>, i32 -> vector<8x256xf32>
    %c2_i32_104 = arith.constant 2 : i32
    %214 = vector.broadcast %c2_i32_104 : i32 to vector<8x256xi32>
    %215 = arith.cmpi sge, %2, %214 : vector<8x256xi32>
    %c2_i32_105 = arith.constant 2 : i32
    %216 = vector.broadcast %c2_i32_105 : i32 to vector<8x256xi32>
    %217 = arith.cmpi sge, %3, %216 : vector<8x256xi32>
    %218 = arith.andi %215, %217 : vector<8x256xi1>
    %cst_106 = arith.constant 0.000000e+00 : f32
    %219 = vector.broadcast %cst_106 : f32 to vector<8x256xf32>
    %220 = arith.select %218, %213, %219 : vector<8x256xi1>, vector<8x256xf32>
    %221 = tpu.concatenate %212, %220 in 0 : vector<8x256xf32>, vector<8x256xf32> -> vector<16x256xf32>
    %222 = arith.truncf %221 : vector<16x256xf32> to vector<16x256xbf16>
    %c64_107 = arith.constant 64 : index
    %c0_108 = arith.constant 0 : index
    %223 = vector.load %arg13[%c64_107, %c0_108] : memref<144x256xbf16, #tpu.memory_space<vmem>>, vector<16x256xbf16>
    tpu.vector_store %arg13[%c64_107, %c0_108], %222 {strides = array<i32>} : memref<144x256xbf16, #tpu.memory_space<vmem>>, vector<16x256xbf16>,
    %c32_i32_109 = arith.constant 32 : i32
    %224 = tpu.dynamic_rotate %148 by %c32_i32_109 dim 1 : vector<8x256xf32>, i32 -> vector<8x256xf32>
    %c2_i32_110 = arith.constant 2 : i32
    %225 = vector.broadcast %c2_i32_110 : i32 to vector<8x256xi32>
    %226 = arith.cmpi sge, %2, %225 : vector<8x256xi32>
    %cst_111 = arith.constant 0.000000e+00 : f32
    %227 = vector.broadcast %cst_111 : f32 to vector<8x256xf32>
    %228 = arith.select %226, %224, %227 : vector<8x256xi1>, vector<8x256xf32>
    %c30_i32_112 = arith.constant 30 : i32
    %229 = tpu.dynamic_rotate %148 by %c30_i32_112 dim 1 : vector<8x256xf32>, i32 -> vector<8x256xf32>
    %c2_i32_113 = arith.constant 2 : i32
    %230 = vector.broadcast %c2_i32_113 : i32 to vector<8x256xi32>
    %231 = arith.cmpi sge, %2, %230 : vector<8x256xi32>
    %c14_i32_114 = arith.constant 14 : i32
    %232 = vector.broadcast %c14_i32_114 : i32 to vector<8x256xi32>
    %233 = arith.cmpi slt, %3, %232 : vector<8x256xi32>
    %234 = arith.andi %231, %233 : vector<8x256xi1>
    %cst_115 = arith.constant 0.000000e+00 : f32
    %235 = vector.broadcast %cst_115 : f32 to vector<8x256xf32>
    %236 = arith.select %234, %229, %235 : vector<8x256xi1>, vector<8x256xf32>
    %237 = tpu.concatenate %228, %236 in 0 : vector<8x256xf32>, vector<8x256xf32> -> vector<16x256xf32>
    %238 = arith.truncf %237 : vector<16x256xf32> to vector<16x256xbf16>
    %c80_116 = arith.constant 80 : index
    %c0_117 = arith.constant 0 : index
    %239 = vector.load %arg13[%c80_116, %c0_117] : memref<144x256xbf16, #tpu.memory_space<vmem>>, vector<16x256xbf16>
    tpu.vector_store %arg13[%c80_116, %c0_117], %238 {strides = array<i32>} : memref<144x256xbf16, #tpu.memory_space<vmem>>, vector<16x256xbf16>,
    %c2_i32_118 = arith.constant 2 : i32
    %240 = tpu.dynamic_rotate %148 by %c2_i32_118 dim 1 : vector<8x256xf32>, i32 -> vector<8x256xf32>
    %c2_i32_119 = arith.constant 2 : i32
    %241 = vector.broadcast %c2_i32_119 : i32 to vector<8x256xi32>
    %242 = arith.cmpi sge, %3, %241 : vector<8x256xi32>
    %cst_120 = arith.constant 0.000000e+00 : f32
    %243 = vector.broadcast %cst_120 : f32 to vector<8x256xf32>
    %244 = arith.select %242, %240, %243 : vector<8x256xi1>, vector<8x256xf32>
    %245 = tpu.concatenate %244, %148 in 0 : vector<8x256xf32>, vector<8x256xf32> -> vector<16x256xf32>
    %246 = arith.truncf %245 : vector<16x256xf32> to vector<16x256xbf16>
    %c96_121 = arith.constant 96 : index
    %c0_122 = arith.constant 0 : index
    %247 = vector.load %arg13[%c96_121, %c0_122] : memref<144x256xbf16, #tpu.memory_space<vmem>>, vector<16x256xbf16>
    tpu.vector_store %arg13[%c96_121, %c0_122], %246 {strides = array<i32>} : memref<144x256xbf16, #tpu.memory_space<vmem>>, vector<16x256xbf16>,
    %c254_i32_123 = arith.constant 254 : i32
    %248 = tpu.dynamic_rotate %148 by %c254_i32_123 dim 1 : vector<8x256xf32>, i32 -> vector<8x256xf32>
    %c14_i32_124 = arith.constant 14 : i32
    %249 = vector.broadcast %c14_i32_124 : i32 to vector<8x256xi32>
    %250 = arith.cmpi slt, %3, %249 : vector<8x256xi32>
    %cst_125 = arith.constant 0.000000e+00 : f32
    %251 = vector.broadcast %cst_125 : f32 to vector<8x256xf32>
    %252 = arith.select %250, %248, %251 : vector<8x256xi1>, vector<8x256xf32>
    %c226_i32_126 = arith.constant 226 : i32
    %253 = tpu.dynamic_rotate %148 by %c226_i32_126 dim 1 : vector<8x256xf32>, i32 -> vector<8x256xf32>
    %c14_i32_127 = arith.constant 14 : i32
    %254 = vector.broadcast %c14_i32_127 : i32 to vector<8x256xi32>
    %255 = arith.cmpi slt, %2, %254 : vector<8x256xi32>
    %c2_i32_128 = arith.constant 2 : i32
    %256 = vector.broadcast %c2_i32_128 : i32 to vector<8x256xi32>
    %257 = arith.cmpi sge, %3, %256 : vector<8x256xi32>
    %258 = arith.andi %255, %257 : vector<8x256xi1>
    %cst_129 = arith.constant 0.000000e+00 : f32
    %259 = vector.broadcast %cst_129 : f32 to vector<8x256xf32>
    %260 = arith.select %258, %253, %259 : vector<8x256xi1>, vector<8x256xf32>
    %261 = tpu.concatenate %252, %260 in 0 : vector<8x256xf32>, vector<8x256xf32> -> vector<16x256xf32>
    %262 = arith.truncf %261 : vector<16x256xf32> to vector<16x256xbf16>
    %c112_130 = arith.constant 112 : index
    %c0_131 = arith.constant 0 : index
    %263 = vector.load %arg13[%c112_130, %c0_131] : memref<144x256xbf16, #tpu.memory_space<vmem>>, vector<16x256xbf16>
    tpu.vector_store %arg13[%c112_130, %c0_131], %262 {strides = array<i32>} : memref<144x256xbf16, #tpu.memory_space<vmem>>, vector<16x256xbf16>,
    %c224_i32_132 = arith.constant 224 : i32
    %264 = tpu.dynamic_rotate %148 by %c224_i32_132 dim 1 : vector<8x256xf32>, i32 -> vector<8x256xf32>
    %c14_i32_133 = arith.constant 14 : i32
    %265 = vector.broadcast %c14_i32_133 : i32 to vector<8x256xi32>
    %266 = arith.cmpi slt, %2, %265 : vector<8x256xi32>
    %cst_134 = arith.constant 0.000000e+00 : f32
    %267 = vector.broadcast %cst_134 : f32 to vector<8x256xf32>
    %268 = arith.select %266, %264, %267 : vector<8x256xi1>, vector<8x256xf32>
    %c222_i32_135 = arith.constant 222 : i32
    %269 = tpu.dynamic_rotate %148 by %c222_i32_135 dim 1 : vector<8x256xf32>, i32 -> vector<8x256xf32>
    %c14_i32_136 = arith.constant 14 : i32
    %270 = vector.broadcast %c14_i32_136 : i32 to vector<8x256xi32>
    %271 = arith.cmpi slt, %2, %270 : vector<8x256xi32>
    %c14_i32_137 = arith.constant 14 : i32
    %272 = vector.broadcast %c14_i32_137 : i32 to vector<8x256xi32>
    %273 = arith.cmpi slt, %3, %272 : vector<8x256xi32>
    %274 = arith.andi %271, %273 : vector<8x256xi1>
    %cst_138 = arith.constant 0.000000e+00 : f32
    %275 = vector.broadcast %cst_138 : f32 to vector<8x256xf32>
    %276 = arith.select %274, %269, %275 : vector<8x256xi1>, vector<8x256xf32>
    %277 = tpu.concatenate %268, %276 in 0 : vector<8x256xf32>, vector<8x256xf32> -> vector<16x256xf32>
    %278 = arith.truncf %277 : vector<16x256xf32> to vector<16x256xbf16>
    %c128_139 = arith.constant 128 : index
    %c0_140 = arith.constant 0 : index
    %279 = vector.load %arg13[%c128_139, %c0_140] : memref<144x256xbf16, #tpu.memory_space<vmem>>, vector<16x256xbf16>
    tpu.vector_store %arg13[%c128_139, %c0_140], %278 {strides = array<i32>} : memref<144x256xbf16, #tpu.memory_space<vmem>>, vector<16x256xbf16>,
    %c0_141 = arith.constant 0 : index
    %c0_142 = arith.constant 0 : index
    %280 = vector.load %arg8[%c0_141, %c0_142] : memref<16x144xbf16, #tpu.memory_space<vmem>>, vector<16x144xbf16>
    %c0_143 = arith.constant 0 : index
    %c0_144 = arith.constant 0 : index
    %281 = vector.load %arg13[%c0_143, %c0_144] : memref<144x256xbf16, #tpu.memory_space<vmem>>, vector<144x256xbf16>
    %cst_145 = arith.constant dense<0.000000e+00> : vector<16x256xf32>
    %282 = tpu.matmul %280, %281, %cst_145 {dimension_numbers = #tpu.dot_dimension_numbers<[1], [0], [0], [1], [0, 0, 1, 1], [], []>} : vector<16x144xbf16>, vector<144x256xbf16>, vector<16x256xf32> -> vector<16x256xf32>
    %c0_146 = arith.constant 0 : index
    %c0_147 = arith.constant 0 : index
    %283 = vector.load %arg9[%c0_146, %c0_147] : memref<16x1xf32, #tpu.memory_space<vmem>>, vector<16x1xf32>
    %284 = vector.broadcast %283 : vector<16x1xf32> to vector<16x256xf32>
    %285 = arith.addf %282, %284 : vector<16x256xf32>
    %cst_148 = arith.constant 0.000000e+00 : f32
    %286 = vector.broadcast %cst_148 : f32 to vector<16x256xf32>
    %287 = arith.maximumf %285, %286 : vector<16x256xf32>
    %288 = arith.truncf %287 : vector<16x256xf32> to vector<16x256xbf16>
    %c0_149 = arith.constant 0 : index
    %c0_150 = arith.constant 0 : index
    %289 = vector.load %arg10[%c0_149, %c0_150] : memref<8x16xbf16, #tpu.memory_space<vmem>>, vector<8x16xbf16>
    %cst_151 = arith.constant dense<0.000000e+00> : vector<8x256xf32>
    %290 = tpu.matmul %289, %288, %cst_151 {dimension_numbers = #tpu.dot_dimension_numbers<[1], [0], [0], [1], [0, 0, 1, 1], [], []>} : vector<8x16xbf16>, vector<16x256xbf16>, vector<8x256xf32> -> vector<8x256xf32>
    %c0_152 = arith.constant 0 : index
    %c0_153 = arith.constant 0 : index
    %291 = vector.load %arg11[%c0_152, %c0_153] : memref<8x1xf32, #tpu.memory_space<vmem>>, vector<8x1xf32>
    %292 = vector.broadcast %291 : vector<8x1xf32> to vector<8x256xf32>
    %293 = arith.addf %290, %292 : vector<8x256xf32>
    %294 = arith.addf %293, %1 : vector<8x256xf32>
    %c0_154 = arith.constant 0 : index
    %c0_155 = arith.constant 0 : index
    %c0_156 = arith.constant 0 : index
    %295 = vector.load %arg12[%c0_154, %c0_155, %c0_156] : memref<1x8x256xf32, #tpu.memory_space<vmem>>, vector<1x8x256xf32>
    %296 = vector.shape_cast %295 : vector<1x8x256xf32> to vector<8x256xf32>
    %297 = vector.shape_cast %294 : vector<8x256xf32> to vector<1x8x256xf32>
    tpu.vector_store %arg12[%c0_154, %c0_155, %c0_156], %297 {strides = array<i32>} : memref<1x8x256xf32, #tpu.memory_space<vmem>>, vector<1x8x256xf32>,
    return
  }
  func.func @transform_0(%arg0: i32) -> (i32, i32, i32) {
    %c0_i32 = arith.constant 0 : i32
    %c0_i32_0 = arith.constant 0 : i32
    %c0_i32_1 = arith.constant 0 : i32
    return %arg0, %c0_i32, %c0_i32_0 : i32, i32, i32
  }
  func.func @transform_1(%arg0: i32) -> (i32, i32) {
    %c0_i32 = arith.constant 0 : i32
    %c0_i32_0 = arith.constant 0 : i32
    %c0_i32_1 = arith.constant 0 : i32
    return %c0_i32, %c0_i32_0 : i32, i32
  }
  func.func @transform_2(%arg0: i32) -> (i32, i32) {
    %c0_i32 = arith.constant 0 : i32
    %c0_i32_0 = arith.constant 0 : i32
    %c0_i32_1 = arith.constant 0 : i32
    return %c0_i32, %c0_i32_0 : i32, i32
  }
  func.func @transform_3(%arg0: i32) -> (i32, i32) {
    %c0_i32 = arith.constant 0 : i32
    %c0_i32_0 = arith.constant 0 : i32
    %c0_i32_1 = arith.constant 0 : i32
    return %c0_i32, %c0_i32_0 : i32, i32
  }
  func.func @transform_4(%arg0: i32) -> (i32, i32) {
    %c0_i32 = arith.constant 0 : i32
    %c0_i32_0 = arith.constant 0 : i32
    %c0_i32_1 = arith.constant 0 : i32
    return %c0_i32, %c0_i32_0 : i32, i32
  }
  func.func @transform_5(%arg0: i32) -> (i32, i32) {
    %c0_i32 = arith.constant 0 : i32
    %c0_i32_0 = arith.constant 0 : i32
    %c0_i32_1 = arith.constant 0 : i32
    return %c0_i32, %c0_i32_0 : i32, i32
  }
  func.func @transform_6(%arg0: i32) -> (i32, i32) {
    %c0_i32 = arith.constant 0 : i32
    %c0_i32_0 = arith.constant 0 : i32
    %c0_i32_1 = arith.constant 0 : i32
    return %c0_i32, %c0_i32_0 : i32, i32
  }
  func.func @transform_7(%arg0: i32) -> (i32, i32) {
    %c0_i32 = arith.constant 0 : i32
    %c0_i32_0 = arith.constant 0 : i32
    %c0_i32_1 = arith.constant 0 : i32
    return %c0_i32, %c0_i32_0 : i32, i32
  }
  func.func @transform_8(%arg0: i32) -> (i32, i32) {
    %c0_i32 = arith.constant 0 : i32
    %c0_i32_0 = arith.constant 0 : i32
    %c0_i32_1 = arith.constant 0 : i32
    return %c0_i32, %c0_i32_0 : i32, i32
  }
  func.func @transform_9(%arg0: i32) -> (i32, i32) {
    %c0_i32 = arith.constant 0 : i32
    %c0_i32_0 = arith.constant 0 : i32
    %c0_i32_1 = arith.constant 0 : i32
    return %c0_i32, %c0_i32_0 : i32, i32
  }
  func.func @transform_10(%arg0: i32) -> (i32, i32) {
    %c0_i32 = arith.constant 0 : i32
    %c0_i32_0 = arith.constant 0 : i32
    %c0_i32_1 = arith.constant 0 : i32
    return %c0_i32, %c0_i32_0 : i32, i32
  }
  func.func @transform_11(%arg0: i32) -> (i32, i32, i32) {
    %c0_i32 = arith.constant 0 : i32
    %c0_i32_0 = arith.constant 0 : i32
    %c0_i32_1 = arith.constant 0 : i32
    return %arg0, %c0_i32, %c0_i32_0 : i32, i32, i32
  }
}

</mosaic_0001>

<llo_original>
// kernel: tpu_custom_call.1
$region0: #{tpu_custom_call.1}
  #allocation0 [shape = 'u32[]', space=smem, size = 0x4, offset = 0x4, fixed_abs, tag = 'smem constant byte address 0x4 - core index']
  #allocation1 [shape = 'u32[144,128]{1,0:T(1,128)}', space=vmem, size = 0x12000, scoped, tag = 'internal scratch']
  #allocation2 [shape = 'bf16[144,256]{1,0:T(8,128)(2,1)}', space=vmem, size = 0x12000, scoped, tag = 'scratch operand']
  %s0 = inlined_call_operand.vmem [shape: f32[2,8,256], index: 0, kind: input, shape index: {}]
  %s1 = inlined_call_operand.vmem [shape: s32[8,256], index: 1, kind: input, shape index: {}]
  %s2 = inlined_call_operand.hbm [shape: s32[8,256], index: 2, kind: input, shape index: {}]
  %s3 = inlined_call_operand.hbm [shape: bf16[16,144], index: 3, kind: input, shape index: {}]
  %s4 = inlined_call_operand.vmem [shape: f32[16,1], index: 4, kind: input, shape index: {}]
  %s5 = inlined_call_operand.hbm [shape: bf16[8,16], index: 5, kind: input, shape index: {}]
  %s6 = inlined_call_operand.vmem [shape: f32[8,1], index: 6, kind: input, shape index: {}]
  %s7 = inlined_call_operand.vmem [shape: bf16[16,144], index: 7, kind: input, shape index: {}]
  %s8 = inlined_call_operand.vmem [shape: f32[16,1], index: 8, kind: input, shape index: {}]
  %s9 = inlined_call_operand.vmem [shape: bf16[8,16], index: 9, kind: input, shape index: {}]
  %s10 = inlined_call_operand.vmem [shape: f32[8,1], index: 10, kind: input, shape index: {}]
  %s11 = inlined_call_operand.hbm [shape: f32[2,8,256], index: 11, kind: output, shape index: {}]
  %s12 = sld [smem:[#allocation0]]
  $region89: #{tpu_custom_call.1} parent=0
    _
  %s14 = ssub.s32 1, %s12
  %s15 = scalar_select 0, %s14, %s12
  $region1: #{tpu_custom_call.1} parent=0
    #allocation3 [shape = 'u8[8192]{0}', space=vmem, size = 0x2000, scoped, tag = 'input window, operand 2, single buffered']
    #allocation4 [shape = 's32[2]{0}', space=sflag, size = 0x8, scoped, tag = 'scoped memory for tpu_custom_call.1']
    #allocation5 [shape = 's32[2]{0}', space=sflag, size = 0x8, scoped, tag = 'scoped memory for tpu_custom_call.1']
    #allocation6 [shape = 'u8[8192]{0}', space=vmem, size = 0x2000, scoped, tag = 'input window, operand 3, single buffered']
    #allocation7 [shape = 's32[1]{0}', space=sflag, size = 0x4, scoped, tag = 'scoped memory for tpu_custom_call.1']
    #allocation8 [shape = 'u8[2048]{0}', space=vmem, size = 0x800, scoped, tag = 'input window, operand 5, single buffered']
    #allocation9 [shape = 'u8[16384]{0}', space=vmem, size = 0x4000, scoped, tag = 'output window, operand 0']
    %16 = vsyncpa [#allocation4], 0
    %17 = vsyncpa [#allocation7], 0
    %18 = vsyncpa [#allocation5], 0
    %s19 = scalar_lea.sflag [#allocation5], 1
    %20 = vsyncpa %s19, 0
    loop: start=0, step=1, limit=4
    $region2: #{tpu_custom_call.1} parent=1 // loop_pre_header
      _
    $region3: #{tpu_custom_call.1} parent=1 // loop_header
      %s22 = sphi 0, %s26
      %p23 = scmp.ge.s32.totalorder %s22, 4
      %s32 = sphi 0, %s34
      %s35 = sphi 0, %s32
      %s36 = sphi 0, %s35
      %s52 = sphi 0, %s36
      %s56 = sphi 0, %s56
      %s58 = sphi 0, %s56
      %s59 = sphi 0, %s58
      %s73 = sphi 0, %s59
      %s77 = sphi 0, %s77
      %s79 = sphi 0, %s77
      %s80 = sphi 0, %s79
      %s94 = sphi 0, %s80
      %s98 = sphi 0, %s98
      %s100 = sphi 0, %s98
      %s101 = sphi 0, %s100
      %s115 = sphi 0, %s101
      %s119 = sphi 0, %s119
      %s121 = sphi 0, %s119
      %s122 = sphi 0, %s121
      %s136 = sphi 0, %s122
      %s140 = sphi 0, %s140
      %s142 = sphi 0, %s140
      %s143 = sphi 0, %s142
      %s157 = sphi 0, %s143
      %s161 = sphi 0, %s161
      %s163 = sphi 0, %s161
      %s164 = sphi 0, %s163
      %s178 = sphi 0, %s164
      %s182 = sphi 0, %s182
      %s184 = sphi 0, %s182
      %s185 = sphi 0, %s184
      %s199 = sphi 0, %s185
      %s203 = sphi 0, %s203
      %s205 = sphi 0, %s203
      %s206 = sphi 0, %s205
      %s220 = sphi 0, %s206
      %s224 = sphi 0, %s224
      %s226 = sphi 0, %s224
      %s227 = sphi 0, %s226
      %s241 = sphi 0, %s227
      %s245 = sphi 0, %s245
      %s247 = sphi 0, %s245
      %s248 = sphi 0, %s247
      %s262 = sphi 0, %s248
      %s268 = sphi 0, %s270
      %s271 = sphi 0, %s268
      %s272 = sphi 0, %s271
      %s288 = sphi 0, %s272
    $region4: #{tpu_custom_call.1} parent=1 // loop_header_branch
      %25 = sbr.rel (%p23) target = $region8
    $region5: #{tpu_custom_call.1} parent=1 // loop_body
      %s27 = ssub.s32 %s22, 1
      %s28 = ssub.s32 %s22, 2
      %s29 = sadd.s32 %s22, 1
      %s30 = ssub.s32 %s22, %s29
      %p31 = scmp.eq.s32.totalorder %s30, 0
      %s33 = sadd.s32 %s32, 1
      %s34 = scalar_select %p31, %s32, %s33
      %p37 = pneg %p31
      %p38 = scmp.eq.s32.totalorder %s22, 1
      %p39 = por %p37, %p38
      %p40 = scmp.ne.s32.totalorder %s32, %s35
      %p41 = scmp.eq.s32.totalorder %s22, 0
      %p42 = por %p40, %p41
      %p43 = scmp.ne.s32.totalorder %s32, %s35
      %p44 = scmp.eq.s32.totalorder %s27, 1
      %p45 = por %p43, %p44
      %p46 = scmp.ne.s32.totalorder %s35, %s36
      %p47 = scmp.eq.s32.totalorder %s27, 0
      %p48 = por %p46, %p47
      %p49 = scmp.ne.s32.totalorder %s35, %s36
      %p50 = scmp.eq.s32.totalorder %s28, 1
      %p51 = por %p49, %p50
      %p53 = scmp.ne.s32.totalorder %s36, %s52
      %p54 = scmp.eq.s32.totalorder %s28, 0
      %p55 = por %p53, %p54
      %s57 = sadd.s32 %s56, 1
      %p60 = scmp.eq.s32.totalorder %s22, 1
      %p61 = scmp.ne.s32.totalorder %s56, %s58
      %p62 = scmp.eq.s32.totalorder %s22, 0
      %p63 = por %p61, %p62
      %p64 = scmp.ne.s32.totalorder %s56, %s58
      %p65 = scmp.eq.s32.totalorder %s27, 1
      %p66 = por %p64, %p65
      %p67 = scmp.ne.s32.totalorder %s58, %s59
      %p68 = scmp.eq.s32.totalorder %s27, 0
      %p69 = por %p67, %p68
      %p70 = scmp.ne.s32.totalorder %s58, %s59
      %p71 = scmp.eq.s32.totalorder %s28, 1
      %p72 = por %p70, %p71
      %p74 = scmp.ne.s32.totalorder %s59, %s73
      %p75 = scmp.eq.s32.totalorder %s28, 0
      %p76 = por %p74, %p75
      %s78 = sadd.s32 %s77, 1
      %p81 = scmp.eq.s32.totalorder %s22, 1
      %p82 = scmp.ne.s32.totalorder %s77, %s79
      %p83 = scmp.eq.s32.totalorder %s22, 0
      %p84 = por %p82, %p83
      %p85 = scmp.ne.s32.totalorder %s77, %s79
      %p86 = scmp.eq.s32.totalorder %s27, 1
      %p87 = por %p85, %p86
      %p88 = scmp.ne.s32.totalorder %s79, %s80
      %p89 = scmp.eq.s32.totalorder %s27, 0
      %p90 = por %p88, %p89
      %p91 = scmp.ne.s32.totalorder %s79, %s80
      %p92 = scmp.eq.s32.totalorder %s28, 1
      %p93 = por %p91, %p92
      %p95 = scmp.ne.s32.totalorder %s80, %s94
      %p96 = scmp.eq.s32.totalorder %s28, 0
      %p97 = por %p95, %p96
      %s99 = sadd.s32 %s98, 1
      %p102 = scmp.eq.s32.totalorder %s22, 1
      %p103 = scmp.ne.s32.totalorder %s98, %s100
      %p104 = scmp.eq.s32.totalorder %s22, 0
      %p105 = por %p103, %p104
      %p106 = scmp.ne.s32.totalorder %s98, %s100
      %p107 = scmp.eq.s32.totalorder %s27, 1
      %p108 = por %p106, %p107
      %p109 = scmp.ne.s32.totalorder %s100, %s101
      %p110 = scmp.eq.s32.totalorder %s27, 0
      %p111 = por %p109, %p110
      %p112 = scmp.ne.s32.totalorder %s100, %s101
      %p113 = scmp.eq.s32.totalorder %s28, 1
      %p114 = por %p112, %p113
      %p116 = scmp.ne.s32.totalorder %s101, %s115
      %p117 = scmp.eq.s32.totalorder %s28, 0
      %p118 = por %p116, %p117
      %s120 = sadd.s32 %s119, 1
      %p123 = scmp.eq.s32.totalorder %s22, 1
      %p124 = scmp.ne.s32.totalorder %s119, %s121
      %p125 = scmp.eq.s32.totalorder %s22, 0
      %p126 = por %p124, %p125
      %p127 = scmp.ne.s32.totalorder %s119, %s121
      %p128 = scmp.eq.s32.totalorder %s27, 1
      %p129 = por %p127, %p128
      %p130 = scmp.ne.s32.totalorder %s121, %s122
      %p131 = scmp.eq.s32.totalorder %s27, 0
      %p132 = por %p130, %p131
      %p133 = scmp.ne.s32.totalorder %s121, %s122
      %p134 = scmp.eq.s32.totalorder %s28, 1
      %p135 = por %p133, %p134
      %p137 = scmp.ne.s32.totalorder %s122, %s136
      %p138 = scmp.eq.s32.totalorder %s28, 0
      %p139 = por %p137, %p138
      %s141 = sadd.s32 %s140, 1
      %p144 = scmp.eq.s32.totalorder %s22, 1
      %p145 = scmp.ne.s32.totalorder %s140, %s142
      %p146 = scmp.eq.s32.totalorder %s22, 0
      %p147 = por %p145, %p146
      %p148 = scmp.ne.s32.totalorder %s140, %s142
      %p149 = scmp.eq.s32.totalorder %s27, 1
      %p150 = por %p148, %p149
      %p151 = scmp.ne.s32.totalorder %s142, %s143
      %p152 = scmp.eq.s32.totalorder %s27, 0
      %p153 = por %p151, %p152
      %p154 = scmp.ne.s32.totalorder %s142, %s143
      %p155 = scmp.eq.s32.totalorder %s28, 1
      %p156 = por %p154, %p155
      %p158 = scmp.ne.s32.totalorder %s143, %s157
      %p159 = scmp.eq.s32.totalorder %s28, 0
      %p160 = por %p158, %p159
      %s162 = sadd.s32 %s161, 1
      %p165 = scmp.eq.s32.totalorder %s22, 1
      %p166 = scmp.ne.s32.totalorder %s161, %s163
      %p167 = scmp.eq.s32.totalorder %s22, 0
      %p168 = por %p166, %p167
      %p169 = scmp.ne.s32.totalorder %s161, %s163
      %p170 = scmp.eq.s32.totalorder %s27, 1
      %p171 = por %p169, %p170
      %p172 = scmp.ne.s32.totalorder %s163, %s164
      %p173 = scmp.eq.s32.totalorder %s27, 0
      %p174 = por %p172, %p173
      %p175 = scmp.ne.s32.totalorder %s163, %s164
      %p176 = scmp.eq.s32.totalorder %s28, 1
      %p177 = por %p175, %p176
      %p179 = scmp.ne.s32.totalorder %s164, %s178
      %p180 = scmp.eq.s32.totalorder %s28, 0
      %p181 = por %p179, %p180
      %s183 = sadd.s32 %s182, 1
      %p186 = scmp.eq.s32.totalorder %s22, 1
      %p187 = scmp.ne.s32.totalorder %s182, %s184
      %p188 = scmp.eq.s32.totalorder %s22, 0
      %p189 = por %p187, %p188
      %p190 = scmp.ne.s32.totalorder %s182, %s184
      %p191 = scmp.eq.s32.totalorder %s27, 1
      %p192 = por %p190, %p191
      %p193 = scmp.ne.s32.totalorder %s184, %s185
      %p194 = scmp.eq.s32.totalorder %s27, 0
      %p195 = por %p193, %p194
      %p196 = scmp.ne.s32.totalorder %s184, %s185
      %p197 = scmp.eq.s32.totalorder %s28, 1
      %p198 = por %p196, %p197
      %p200 = scmp.ne.s32.totalorder %s185, %s199
      %p201 = scmp.eq.s32.totalorder %s28, 0
      %p202 = por %p200, %p201
      %s204 = sadd.s32 %s203, 1
      %p207 = scmp.eq.s32.totalorder %s22, 1
      %p208 = scmp.ne.s32.totalorder %s203, %s205
      %p209 = scmp.eq.s32.totalorder %s22, 0
      %p210 = por %p208, %p209
      %p211 = scmp.ne.s32.totalorder %s203, %s205
      %p212 = scmp.eq.s32.totalorder %s27, 1
      %p213 = por %p211, %p212
      %p214 = scmp.ne.s32.totalorder %s205, %s206
      %p215 = scmp.eq.s32.totalorder %s27, 0
      %p216 = por %p214, %p215
      %p217 = scmp.ne.s32.totalorder %s205, %s206
      %p218 = scmp.eq.s32.totalorder %s28, 1
      %p219 = por %p217, %p218
      %p221 = scmp.ne.s32.totalorder %s206, %s220
      %p222 = scmp.eq.s32.totalorder %s28, 0
      %p223 = por %p221, %p222
      %s225 = sadd.s32 %s224, 1
      %p228 = scmp.eq.s32.totalorder %s22, 1
      %p229 = scmp.ne.s32.totalorder %s224, %s226
      %p230 = scmp.eq.s32.totalorder %s22, 0
      %p231 = por %p229, %p230
      %p232 = scmp.ne.s32.totalorder %s224, %s226
      %p233 = scmp.eq.s32.totalorder %s27, 1
      %p234 = por %p232, %p233
      %p235 = scmp.ne.s32.totalorder %s226, %s227
      %p236 = scmp.eq.s32.totalorder %s27, 0
      %p237 = por %p235, %p236
      %p238 = scmp.ne.s32.totalorder %s226, %s227
      %p239 = scmp.eq.s32.totalorder %s28, 1
      %p240 = por %p238, %p239
      %p242 = scmp.ne.s32.totalorder %s227, %s241
      %p243 = scmp.eq.s32.totalorder %s28, 0
      %p244 = por %p242, %p243
      %s246 = sadd.s32 %s245, 1
      %p249 = scmp.eq.s32.totalorder %s22, 1
      %p250 = scmp.ne.s32.totalorder %s245, %s247
      %p251 = scmp.eq.s32.totalorder %s22, 0
      %p252 = por %p250, %p251
      %p253 = scmp.ne.s32.totalorder %s245, %s247
      %p254 = scmp.eq.s32.totalorder %s27, 1
      %p255 = por %p253, %p254
      %p256 = scmp.ne.s32.totalorder %s247, %s248
      %p257 = scmp.eq.s32.totalorder %s27, 0
      %p258 = por %p256, %p257
      %p259 = scmp.ne.s32.totalorder %s247, %s248
      %p260 = scmp.eq.s32.totalorder %s28, 1
      %p261 = por %p259, %p260
      %p263 = scmp.ne.s32.totalorder %s248, %s262
      %p264 = scmp.eq.s32.totalorder %s28, 0
      %p265 = por %p263, %p264
      %s266 = ssub.s32 %s22, %s29
      %p267 = scmp.eq.s32.totalorder %s266, 0
      %s269 = sadd.s32 %s268, 1
      %s270 = scalar_select %p267, %s268, %s269
      %p273 = pneg %p267
      %p274 = scmp.eq.s32.totalorder %s22, 1
      %p275 = por %p273, %p274
      %p276 = scmp.ne.s32.totalorder %s268, %s271
      %p277 = scmp.eq.s32.totalorder %s22, 0
      %p278 = por %p276, %p277
      %p279 = scmp.ne.s32.totalorder %s268, %s271
      %p280 = scmp.eq.s32.totalorder %s27, 1
      %p281 = por %p279, %p280
      %p282 = scmp.ne.s32.totalorder %s271, %s272
      %p283 = scmp.eq.s32.totalorder %s27, 0
      %p284 = por %p282, %p283
      %p285 = scmp.ne.s32.totalorder %s271, %s272
      %p286 = scmp.eq.s32.totalorder %s28, 1
      %p287 = por %p285, %p286
      %p289 = scmp.ne.s32.totalorder %s272, %s288
      %p290 = scmp.eq.s32.totalorder %s28, 0
      %p291 = por %p289, %p290
      %p292 = scmp.le.s32.totalorder 1, %s22
      %p293 = scmp.lt.s32.totalorder %s22, 3
      %p294 = pnand %p292, %p293
      %p295 = pneg %p294
      // Predicated region
      $region9: #{tpu_custom_call.1} parent=5 // pred_check
        _
      $region10: #{tpu_custom_call.1} parent=5 // pred_check_branch
        %297 = sbr.rel (%p294) target = $region12
      $region11: #{tpu_custom_call.1} parent=5 // pred_region
        %s298 = ssub.s32 %s22, 1
        // Predicated region
        $region13: #{tpu_custom_call.1} parent=11 // pred_check
          %p299 = pneg %p69
        $region14: #{tpu_custom_call.1} parent=11 // pred_check_branch
          %301 = sbr.rel (%p299) target = $region16
        $region15: #{tpu_custom_call.1} parent=11 // pred_region
          _
        $region16: #{tpu_custom_call.1} parent=11 // pred_fallthru
          _
        // Predicated region
        $region17: #{tpu_custom_call.1} parent=11 // pred_check
          %p302 = pneg %p90
        $region18: #{tpu_custom_call.1} parent=11 // pred_check_branch
          %304 = sbr.rel (%p302) target = $region20
        $region19: #{tpu_custom_call.1} parent=11 // pred_region
          %s306 = ssub.s32 256, 256
          %307 = vsyncadd [#allocation4], %s306
          %s309 = sshll.u32 [#allocation3], 4
          %s310 = int_to_ptr.vmem [resolvable:$true] %s309
          %312 = dma.hbm_to_vmem [thread:$0]  %s2, 256, %s310, [#allocation4]
        $region20: #{tpu_custom_call.1} parent=11 // pred_fallthru
          _
        // Predicated region
        $region21: #{tpu_custom_call.1} parent=11 // pred_check
          %p313 = pneg %p111
        $region22: #{tpu_custom_call.1} parent=11 // pred_check_branch
          %315 = sbr.rel (%p313) target = $region24
        $region23: #{tpu_custom_call.1} parent=11 // pred_region
          %s317 = ssub.s32 256, 256
          %318 = vsyncadd [#allocation7], %s317
          %s319 = sshll.u32 [#allocation6], 4
          %s320 = int_to_ptr.vmem [resolvable:$true] %s319
          %325 = dma.hbm_to_vmem [thread:$0]  %s3, 256, %s320, [#allocation7], 128, 128, 8
        $region24: #{tpu_custom_call.1} parent=11 // pred_fallthru
          _
        // Predicated region
        $region25: #{tpu_custom_call.1} parent=11 // pred_check
          %p326 = pneg %p132
        $region26: #{tpu_custom_call.1} parent=11 // pred_check_branch
          %328 = sbr.rel (%p326) target = $region28
        $region27: #{tpu_custom_call.1} parent=11 // pred_region
          _
        $region28: #{tpu_custom_call.1} parent=11 // pred_fallthru
          _
        // Predicated region
        $region29: #{tpu_custom_call.1} parent=11 // pred_check
          %p329 = pneg %p153
        $region30: #{tpu_custom_call.1} parent=11 // pred_check_branch
          %331 = sbr.rel (%p329) target = $region32
        $region31: #{tpu_custom_call.1} parent=11 // pred_region
          %s333 = ssub.s32 64, 64
          %334 = vsyncadd [#allocation7], %s333
          %s336 = sshll.u32 [#allocation8], 4
          %s337 = int_to_ptr.vmem [resolvable:$true] %s336
          %339 = dma.hbm_to_vmem [thread:$0]  %s5, 64, %s337, [#allocation7]
        $region32: #{tpu_custom_call.1} parent=11 // pred_fallthru
          _
        // Predicated region
        $region33: #{tpu_custom_call.1} parent=11 // pred_check
          %p340 = pneg %p174
        $region34: #{tpu_custom_call.1} parent=11 // pred_check_branch
          %342 = sbr.rel (%p340) target = $region36
        $region35: #{tpu_custom_call.1} parent=11 // pred_region
          _
        $region36: #{tpu_custom_call.1} parent=11 // pred_fallthru
          _
        // Predicated region
        $region37: #{tpu_custom_call.1} parent=11 // pred_check
          %p343 = pneg %p195
        $region38: #{tpu_custom_call.1} parent=11 // pred_check_branch
          %345 = sbr.rel (%p343) target = $region40
        $region39: #{tpu_custom_call.1} parent=11 // pred_region
          _
        $region40: #{tpu_custom_call.1} parent=11 // pred_fallthru
          _
        // Predicated region
        $region41: #{tpu_custom_call.1} parent=11 // pred_check
          %p346 = pneg %p216
        $region42: #{tpu_custom_call.1} parent=11 // pred_check_branch
          %348 = sbr.rel (%p346) target = $region44
        $region43: #{tpu_custom_call.1} parent=11 // pred_region
          _
        $region44: #{tpu_custom_call.1} parent=11 // pred_fallthru
          _
        // Predicated region
        $region45: #{tpu_custom_call.1} parent=11 // pred_check
          %p349 = pneg %p237
        $region46: #{tpu_custom_call.1} parent=11 // pred_check_branch
          %351 = sbr.rel (%p349) target = $region48
        $region47: #{tpu_custom_call.1} parent=11 // pred_region
          _
        $region48: #{tpu_custom_call.1} parent=11 // pred_fallthru
          _
        // Predicated region
        $region49: #{tpu_custom_call.1} parent=11 // pred_check
          %p352 = pneg %p258
        $region50: #{tpu_custom_call.1} parent=11 // pred_check_branch
          %354 = sbr.rel (%p352) target = $region52
        $region51: #{tpu_custom_call.1} parent=11 // pred_region
          _
        $region52: #{tpu_custom_call.1} parent=11 // pred_fallthru
          _
      $region12: #{tpu_custom_call.1} parent=5 // pred_fallthru
        _
      %p355 = scmp.lt.s32.totalorder %s22, 2
      // Predicated region
      $region53: #{tpu_custom_call.1} parent=5 // pred_check
        %p356 = pneg %p355
      $region54: #{tpu_custom_call.1} parent=5 // pred_check_branch
        %358 = sbr.rel (%p356) target = $region56
      $region55: #{tpu_custom_call.1} parent=5 // pred_region
        // Predicated region
        $region57: #{tpu_custom_call.1} parent=55 // pred_check
          %p359 = pneg %p42
        $region58: #{tpu_custom_call.1} parent=55 // pred_check_branch
          %361 = sbr.rel (%p359) target = $region60
        $region59: #{tpu_custom_call.1} parent=55 // pred_region
          %p362 = scmp.lt.s32.totalorder %s22, 1
          %s363 = scalar_select %p362, %s22, 1
          %s364 = smul.addr %s363, 2
          %s365 = smul.addr %s364, 8
          %s366 = scalar_lea.vmem %s0, %s365
        $region60: #{tpu_custom_call.1} parent=55 // pred_fallthru
          _
      $region56: #{tpu_custom_call.1} parent=5 // pred_fallthru
        _
      %p367 = scmp.le.s32.totalorder 1, %s22
      %p368 = scmp.lt.s32.totalorder %s22, 3
      %p369 = pnand %p367, %p368
      %p370 = pneg %p369
      // Predicated region
      $region61: #{tpu_custom_call.1} parent=5 // pred_check
        _
      $region62: #{tpu_custom_call.1} parent=5 // pred_check_branch
        %372 = sbr.rel (%p369) target = $region64
      $region63: #{tpu_custom_call.1} parent=5 // pred_region
        %s373 = ssub.s32 %s22, 1
        // Predicated region
        $region65: #{tpu_custom_call.1} parent=63 // pred_check
          %p374 = pneg %p90
        $region66: #{tpu_custom_call.1} parent=63 // pred_check_branch
          %376 = sbr.rel (%p374) target = $region68
        $region67: #{tpu_custom_call.1} parent=63 // pred_region
          %377 = dma.done [#allocation4], 256
        $region68: #{tpu_custom_call.1} parent=63 // pred_fallthru
          _
        // Predicated region
        $region69: #{tpu_custom_call.1} parent=63 // pred_check
          %p378 = pneg %p111
        $region70: #{tpu_custom_call.1} parent=63 // pred_check_branch
          %380 = sbr.rel (%p378) target = $region72
        $region71: #{tpu_custom_call.1} parent=63 // pred_region
          %381 = dma.done [#allocation7], 256
        $region72: #{tpu_custom_call.1} parent=63 // pred_fallthru
          _
        // Predicated region
        $region73: #{tpu_custom_call.1} parent=63 // pred_check
          %p382 = pneg %p153
        $region74: #{tpu_custom_call.1} parent=63 // pred_check_branch
          %384 = sbr.rel (%p382) target = $region76
        $region75: #{tpu_custom_call.1} parent=63 // pred_region
          %385 = dma.done [#allocation7], 64
        $region76: #{tpu_custom_call.1} parent=63 // pred_fallthru
          _
        %p386 = scmp.lt.s32.totalorder %s27, 1
        %s387 = scalar_select %p386, %s27, 1
        %s388 = smul.addr %s387, 2
        %s389 = smul.addr %s388, 8
        %s390 = scalar_lea.vmem %s0, %s389
        %p391 = pneg %p48
        %p392 = pneg %p45
        %p393 = pneg %p69
        %p394 = pneg %p66
        %p395 = pneg %p90
        %p396 = pneg %p87
        %p397 = pneg %p111
        %p398 = pneg %p108
        %p399 = pneg %p132
        %p400 = pneg %p129
        %p401 = pneg %p153
        %p402 = pneg %p150
        %p403 = pneg %p174
        %p404 = pneg %p171
        %p405 = pneg %p195
        %p406 = pneg %p192
        %p407 = pneg %p216
        %p408 = pneg %p213
        %p409 = pneg %p237
        %p410 = pneg %p234
        %p411 = pneg %p258
        %p412 = pneg %p255
        %p413 = pneg %p284
        %p414 = pneg %p281
        %s415 = sand.u32 %s271, 1
        %s416 = scalar_lea.sflag [#allocation5], %s415
        %s417 = sand.u32 %s271, 1
        %s418 = smul.addr %s417, 16
        %s419 = scalar_lea.vmem [#allocation9], %s418
        %p420 = scmp.lt.s32.totalorder %s27, 1
        %s421 = scalar_select %p420, %s27, 1
        %s422 = smul.addr %s421, 2
        %s423 = smul.addr %s422, 8
        %s424 = scalar_lea.vmem %s0, %s423
        %v426 = vld [vmem:[%s424] sm:$0xff]
        %v427 = vld [vmem:[%s424 + $0x8] sm:$0xff]
        %v428 = vld [vmem:[%s1] sm:$0xff]
        %v429 = vld [vmem:[%s1 + $0x8] sm:$0xff]
        %v430 = vld [vmem:[#allocation3] sm:$0xff]
        %v431 = vld [vmem:[#allocation3 + $0x8] sm:$0xff]
        %432 = vrot.lane.b32.xlu0 %v426, 17
        %v433 = vpop.permute.xlu0 %432
        %434 = vrot.lane.b32.xlu0 %v427, 17
        %v435 = vpop.permute.xlu0 %434
        %v436 = vlaneseq
        %v437 = vand.u32 %v436, 127
        %vm438 = vcmp.lt.s32.totalorder %v437, 17
        %v439 = vsel %vm438, %v433, %v435
        %v440 = vsel %vm438, %v435, %v433
        %vm441 = vcmp.ge.s32.totalorder %v428, 1
        %vm442 = vcmp.ge.s32.totalorder %v429, 1
        %vm443 = vcmp.ge.s32.totalorder %v430, 1
        %vm444 = vcmp.ge.s32.totalorder %v431, 1
        %vm445 = vmand %vm441, %vm443
        %vm446 = vmand %vm442, %vm444
        %v447 = vsel %vm445, %v440, 0.0
        %v448 = vsel %vm446, %v439, 0.0
        %449 = vrot.lane.b32.xlu0 %v426, 16
        %v450 = vpop.permute.xlu0 %449
        %451 = vrot.lane.b32.xlu0 %v427, 16
        %v452 = vpop.permute.xlu0 %451
        %vm453 = vcmp.lt.s32.totalorder %v437, 16
        %v454 = vsel %vm453, %v450, %v452
        %v455 = vsel %vm453, %v452, %v450
        %v456 = vsel %vm441, %v455, 0.0
        %v457 = vsel %vm442, %v454, 0.0
        %v458 = vpack.c.bf16 %v456, %v447
        %v459 = vpack.c.bf16 %v457, %v448
        %v462 = vunpack.c.l.b16 %v458
        %v463 = vunpack.c.l.b16 %v459
        %v464 = vunpack.c.h.b16 %v458
        %v465 = vunpack.c.h.b16 %v459
        %v466 = vpack.c.b16 %v463, %v462
        %v467 = vpack.c.b16 %v465, %v464
        %470 = vst [vmem:[#allocation2] sm:$0xff] %v466
        %471 = vst [vmem:[#allocation2 + $0x8] sm:$0xff] %v467
        %472 = vrot.lane.b32.xlu0 %v426, 15
        %v473 = vpop.permute.xlu0 %472
        %474 = vrot.lane.b32.xlu0 %v427, 15
        %v475 = vpop.permute.xlu0 %474
        %vm476 = vcmp.lt.s32.totalorder %v437, 15
        %v477 = vsel %vm476, %v473, %v475
        %v478 = vsel %vm476, %v475, %v473
        %vm479 = vcmp.lt.s32.totalorder %v430, 15
        %vm480 = vcmp.lt.s32.totalorder %v431, 15
        %vm481 = vmand %vm441, %vm479
        %vm482 = vmand %vm442, %vm480
        %v483 = vsel %vm481, %v478, 0.0
        %v484 = vsel %vm482, %v477, 0.0
        %485 = vrot.lane.b32.xlu0 %v426, 1
        %v486 = vpop.permute.xlu0 %485
        %487 = vrot.lane.b32.xlu0 %v427, 1
        %v488 = vpop.permute.xlu0 %487
        %vm489 = vcmp.lt.s32.totalorder %v437, 1
        %v490 = vsel %vm489, %v486, %v488
        %v491 = vsel %vm489, %v488, %v486
        %v492 = vsel %vm443, %v491, 0.0
        %v493 = vsel %vm444, %v490, 0.0
        %v494 = vpack.c.bf16 %v492, %v483
        %v495 = vpack.c.bf16 %v493, %v484
        %v498 = vunpack.c.l.b16 %v494
        %v499 = vunpack.c.l.b16 %v495
        %v500 = vunpack.c.h.b16 %v494
        %v501 = vunpack.c.h.b16 %v495
        %v502 = vpack.c.b16 %v499, %v498
        %v503 = vpack.c.b16 %v501, %v500
        %506 = vst [vmem:[#allocation2 + $0x10] sm:$0xff] %v502
        %507 = vst [vmem:[#allocation2 + $0x18] sm:$0xff] %v503
        %508 = vrot.lane.b32.xlu0 %v426, 127
        %v509 = vpop.permute.xlu0 %508
        %510 = vrot.lane.b32.xlu0 %v427, 127
        %v511 = vpop.permute.xlu0 %510
        %vm512 = vcmp.lt.s32.totalorder %v437, 127
        %v513 = vsel %vm512, %v509, %v511
        %v514 = vsel %vm512, %v511, %v509
        %v515 = vsel %vm479, %v513, 0.0
        %v516 = vsel %vm480, %v514, 0.0
        %v517 = vpack.c.bf16 %v515, %v426
        %v518 = vpack.c.bf16 %v516, %v427
        %v521 = vunpack.c.l.b16 %v517
        %v522 = vunpack.c.l.b16 %v518
        %v523 = vunpack.c.h.b16 %v517
        %v524 = vunpack.c.h.b16 %v518
        %v525 = vpack.c.b16 %v522, %v521
        %v526 = vpack.c.b16 %v524, %v523
        %529 = vst [vmem:[#allocation2 + $0x20] sm:$0xff] %v525
        %530 = vst [vmem:[#allocation2 + $0x28] sm:$0xff] %v526
        %531 = vrot.lane.b32.xlu0 %v426, 113
        %v532 = vpop.permute.xlu0 %531
        %533 = vrot.lane.b32.xlu0 %v427, 113
        %v534 = vpop.permute.xlu0 %533
        %vm535 = vcmp.lt.s32.totalorder %v437, 113
        %v536 = vsel %vm535, %v532, %v534
        %v537 = vsel %vm535, %v534, %v532
        %vm538 = vcmp.lt.s32.totalorder %v428, 15
        %vm539 = vcmp.lt.s32.totalorder %v429, 15
        %vm540 = vmand %vm538, %vm443
        %vm541 = vmand %vm539, %vm444
        %v542 = vsel %vm540, %v536, 0.0
        %v543 = vsel %vm541, %v537, 0.0
        %544 = vrot.lane.b32.xlu0 %v426, 112
        %v545 = vpop.permute.xlu0 %544
        %546 = vrot.lane.b32.xlu0 %v427, 112
        %v547 = vpop.permute.xlu0 %546
        %vm548 = vcmp.lt.s32.totalorder %v437, 112
        %v549 = vsel %vm548, %v545, %v547
        %v550 = vsel %vm548, %v547, %v545
        %v551 = vsel %vm538, %v549, 0.0
        %v552 = vsel %vm539, %v550, 0.0
        %v553 = vpack.c.bf16 %v551, %v542
        %v554 = vpack.c.bf16 %v552, %v543
        %v557 = vunpack.c.l.b16 %v553
        %v558 = vunpack.c.l.b16 %v554
        %v559 = vunpack.c.h.b16 %v553
        %v560 = vunpack.c.h.b16 %v554
        %v561 = vpack.c.b16 %v558, %v557
        %v562 = vpack.c.b16 %v560, %v559
        %565 = vst [vmem:[#allocation2 + $0x30] sm:$0xff] %v561
        %566 = vst [vmem:[#allocation2 + $0x38] sm:$0xff] %v562
        %567 = vrot.lane.b32.xlu0 %v426, 111
        %v568 = vpop.permute.xlu0 %567
        %569 = vrot.lane.b32.xlu0 %v427, 111
        %v570 = vpop.permute.xlu0 %569
        %vm571 = vcmp.lt.s32.totalorder %v437, 111
        %v572 = vsel %vm571, %v568, %v570
        %v573 = vsel %vm571, %v570, %v568
        %vm574 = vmand %vm538, %vm479
        %vm575 = vmand %vm539, %vm480
        %v576 = vsel %vm574, %v572, 0.0
        %v577 = vsel %vm575, %v573, 0.0
        %578 = vrot.lane.b32.xlu0 %v426, 34
        %v579 = vpop.permute.xlu0 %578
        %580 = vrot.lane.b32.xlu0 %v427, 34
        %v581 = vpop.permute.xlu0 %580
        %vm582 = vcmp.lt.s32.totalorder %v437, 34
        %v583 = vsel %vm582, %v579, %v581
        %v584 = vsel %vm582, %v581, %v579
        %vm585 = vcmp.ge.s32.totalorder %v428, 2
        %vm586 = vcmp.ge.s32.totalorder %v429, 2
        %vm587 = vcmp.ge.s32.totalorder %v430, 2
        %vm588 = vcmp.ge.s32.totalorder %v431, 2
        %vm589 = vmand %vm585, %vm587
        %vm590 = vmand %vm586, %vm588
        %v591 = vsel %vm589, %v584, 0.0
        %v592 = vsel %vm590, %v583, 0.0
        %v593 = vpack.c.bf16 %v591, %v576
        %v594 = vpack.c.bf16 %v592, %v577
        %v597 = vunpack.c.l.b16 %v593
        %v598 = vunpack.c.l.b16 %v594
        %v599 = vunpack.c.h.b16 %v593
        %v600 = vunpack.c.h.b16 %v594
        %v601 = vpack.c.b16 %v598, %v597
        %v602 = vpack.c.b16 %v600, %v599
        %605 = vst [vmem:[#allocation2 + $0x40] sm:$0xff] %v601
        %606 = vst [vmem:[#allocation2 + $0x48] sm:$0xff] %v602
        %607 = vrot.lane.b32.xlu0 %v426, 32
        %v608 = vpop.permute.xlu0 %607
        %609 = vrot.lane.b32.xlu0 %v427, 32
        %v610 = vpop.permute.xlu0 %609
        %vm611 = vcmp.lt.s32.totalorder %v437, 32
        %v612 = vsel %vm611, %v608, %v610
        %v613 = vsel %vm611, %v610, %v608
        %v614 = vsel %vm585, %v613, 0.0
        %v615 = vsel %vm586, %v612, 0.0
        %616 = vrot.lane.b32.xlu0 %v426, 30
        %v617 = vpop.permute.xlu0 %616
        %618 = vrot.lane.b32.xlu0 %v427, 30
        %v619 = vpop.permute.xlu0 %618
        %vm620 = vcmp.lt.s32.totalorder %v437, 30
        %v621 = vsel %vm620, %v617, %v619
        %v622 = vsel %vm620, %v619, %v617
        %vm623 = vcmp.lt.s32.totalorder %v430, 14
        %vm624 = vcmp.lt.s32.totalorder %v431, 14
        %vm625 = vmand %vm585, %vm623
        %vm626 = vmand %vm586, %vm624
        %v627 = vsel %vm625, %v622, 0.0
        %v628 = vsel %vm626, %v621, 0.0
        %v629 = vpack.c.bf16 %v627, %v614
        %v630 = vpack.c.bf16 %v628, %v615
        %v633 = vunpack.c.l.b16 %v629
        %v634 = vunpack.c.l.b16 %v630
        %v635 = vunpack.c.h.b16 %v629
        %v636 = vunpack.c.h.b16 %v630
        %v637 = vpack.c.b16 %v634, %v633
        %v638 = vpack.c.b16 %v636, %v635
        %641 = vst [vmem:[#allocation2 + $0x50] sm:$0xff] %v637
        %642 = vst [vmem:[#allocation2 + $0x58] sm:$0xff] %v638
        %643 = vrot.lane.b32.xlu0 %v426, 2
        %v644 = vpop.permute.xlu0 %643
        %645 = vrot.lane.b32.xlu0 %v427, 2
        %v646 = vpop.permute.xlu0 %645
        %vm647 = vcmp.lt.s32.totalorder %v437, 2
        %v648 = vsel %vm647, %v644, %v646
        %v649 = vsel %vm647, %v646, %v644
        %v650 = vsel %vm587, %v649, 0.0
        %v651 = vsel %vm588, %v648, 0.0
        %v652 = vpack.c.bf16 %v426, %v650
        %v653 = vpack.c.bf16 %v427, %v651
        %v656 = vunpack.c.l.b16 %v652
        %v657 = vunpack.c.l.b16 %v653
        %v658 = vunpack.c.h.b16 %v652
        %v659 = vunpack.c.h.b16 %v653
        %v660 = vpack.c.b16 %v657, %v656
        %v661 = vpack.c.b16 %v659, %v658
        %664 = vst [vmem:[#allocation2 + $0x60] sm:$0xff] %v660
        %665 = vst [vmem:[#allocation2 + $0x68] sm:$0xff] %v661
        %666 = vrot.lane.b32.xlu0 %v426, 126
        %v667 = vpop.permute.xlu0 %666
        %668 = vrot.lane.b32.xlu0 %v427, 126
        %v669 = vpop.permute.xlu0 %668
        %vm670 = vcmp.lt.s32.totalorder %v437, 126
        %v671 = vsel %vm670, %v667, %v669
        %v672 = vsel %vm670, %v669, %v667
        %v673 = vsel %vm623, %v671, 0.0
        %v674 = vsel %vm624, %v672, 0.0
        %675 = vrot.lane.b32.xlu0 %v426, 98
        %v676 = vpop.permute.xlu0 %675
        %677 = vrot.lane.b32.xlu0 %v427, 98
        %v678 = vpop.permute.xlu0 %677
        %vm679 = vcmp.lt.s32.totalorder %v437, 98
        %v680 = vsel %vm679, %v676, %v678
        %v681 = vsel %vm679, %v678, %v676
        %vm682 = vcmp.lt.s32.totalorder %v428, 14
        %vm683 = vcmp.lt.s32.totalorder %v429, 14
        %vm684 = vmand %vm682, %vm587
        %vm685 = vmand %vm683, %vm588
        %v686 = vsel %vm684, %v680, 0.0
        %v687 = vsel %vm685, %v681, 0.0
        %v688 = vpack.c.bf16 %v686, %v673
        %v689 = vpack.c.bf16 %v687, %v674
        %v692 = vunpack.c.l.b16 %v688
        %v693 = vunpack.c.l.b16 %v689
        %v694 = vunpack.c.h.b16 %v688
        %v695 = vunpack.c.h.b16 %v689
        %v696 = vpack.c.b16 %v693, %v692
        %v697 = vpack.c.b16 %v695, %v694
        %700 = vst [vmem:[#allocation2 + $0x70] sm:$0xff] %v696
        %701 = vst [vmem:[#allocation2 + $0x78] sm:$0xff] %v697
        %702 = vrot.lane.b32.xlu0 %v426, 96
        %v703 = vpop.permute.xlu0 %702
        %704 = vrot.lane.b32.xlu0 %v427, 96
        %v705 = vpop.permute.xlu0 %704
        %vm706 = vcmp.lt.s32.totalorder %v437, 96
        %v707 = vsel %vm706, %v703, %v705
        %v708 = vsel %vm706, %v705, %v703
        %v709 = vsel %vm682, %v707, 0.0
        %v710 = vsel %vm683, %v708, 0.0
        %711 = vrot.lane.b32.xlu0 %v426, 94
        %v712 = vpop.permute.xlu0 %711
        %713 = vrot.lane.b32.xlu0 %v427, 94
        %v714 = vpop.permute.xlu0 %713
        %vm715 = vcmp.lt.s32.totalorder %v437, 94
        %v716 = vsel %vm715, %v712, %v714
        %v717 = vsel %vm715, %v714, %v712
        %vm718 = vmand %vm682, %vm623
        %vm719 = vmand %vm683, %vm624
        %v720 = vsel %vm718, %v716, 0.0
        %v721 = vsel %vm719, %v717, 0.0
        %v722 = vpack.c.bf16 %v720, %v709
        %v723 = vpack.c.bf16 %v721, %v710
        %v726 = vunpack.c.l.b16 %v722
        %v727 = vunpack.c.l.b16 %v723
        %v728 = vunpack.c.h.b16 %v722
        %v729 = vunpack.c.h.b16 %v723
        %v730 = vpack.c.b16 %v727, %v726
        %v731 = vpack.c.b16 %v729, %v728
        %734 = vst [vmem:[#allocation2 + $0x80] sm:$0xff] %v730
        %735 = vst [vmem:[#allocation2 + $0x88] sm:$0xff] %v731
        %v736 = vld [vmem:[#allocation6] sm:$0xff]
        %v737 = vld [vmem:[#allocation6 + $0x8] sm:$0xff]
        %v738 = vld [vmem:[#allocation2] sm:$0xff]
        %v739 = vld [vmem:[#allocation2 + $0x8] sm:$0xff]
        %v740 = vld [vmem:[#allocation2 + $0x10] sm:$0xff]
        %v741 = vld [vmem:[#allocation2 + $0x18] sm:$0xff]
        %v742 = vld [vmem:[#allocation2 + $0x20] sm:$0xff]
        %v743 = vld [vmem:[#allocation2 + $0x28] sm:$0xff]
        %v744 = vld [vmem:[#allocation2 + $0x30] sm:$0xff]
        %v745 = vld [vmem:[#allocation2 + $0x38] sm:$0xff]
        %v746 = vld [vmem:[#allocation2 + $0x40] sm:$0xff]
        %v747 = vld [vmem:[#allocation2 + $0x48] sm:$0xff]
        %v748 = vld [vmem:[#allocation2 + $0x50] sm:$0xff]
        %v749 = vld [vmem:[#allocation2 + $0x58] sm:$0xff]
        %v750 = vld [vmem:[#allocation2 + $0x60] sm:$0xff]
        %v751 = vld [vmem:[#allocation2 + $0x68] sm:$0xff]
        %v752 = vld [vmem:[#allocation2 + $0x70] sm:$0xff]
        %v753 = vld [vmem:[#allocation2 + $0x78] sm:$0xff]
        %v754 = vld [vmem:[#allocation2 + $0x80] sm:$0xff]
        %v755 = vld [vmem:[#allocation2 + $0x88] sm:$0xff]
        %v756 = vld [vmem:[%s4] sm:$0xff]
        %v757 = vld [vmem:[%s4 + $0x8] sm:$0xff]
        %759 = vset.pattern.permute.xlu0 0
        %760 = vperm.xlu0 %759, %v756
        %v761 = vpop.permute.xlu0 %760
        %764 = vset.pattern.permute.xlu0 0
        %765 = vperm.xlu0 %764, %v757
        %v766 = vpop.permute.xlu0 %765
        %v770 = vunpack.c.l.b16 %v736
        %v771 = vunpack.c.h.b16 %v736
        %v772 = vunpack.c.l.b16 %v737
        %v773 = vunpack.c.h.b16 %v737
        %v774 = vpack.c.b16 %v772, %v770
        %v775 = vpack.c.b16 %v773, %v771
        %v795 = vunpack.c.l.b16 %v738
        %v796 = vunpack.c.h.b16 %v738
        %v797 = vunpack.c.l.b16 %v739
        %v798 = vunpack.c.h.b16 %v739
        %v799 = vunpack.c.l.b16 %v740
        %v800 = vunpack.c.h.b16 %v740
        %v801 = vunpack.c.l.b16 %v741
        %v802 = vunpack.c.h.b16 %v741
        %v803 = vunpack.c.l.b16 %v742
        %v804 = vunpack.c.h.b16 %v742
        %v805 = vunpack.c.l.b16 %v743
        %v806 = vunpack.c.h.b16 %v743
        %v807 = vunpack.c.l.b16 %v744
        %v808 = vunpack.c.h.b16 %v744
        %v809 = vunpack.c.l.b16 %v745
        %v810 = vunpack.c.h.b16 %v745
        %v811 = vunpack.c.l.b16 %v746
        %v812 = vunpack.c.h.b16 %v746
        %v813 = vunpack.c.l.b16 %v747
        %v814 = vunpack.c.h.b16 %v747
        %v815 = vunpack.c.l.b16 %v748
        %v816 = vunpack.c.h.b16 %v748
        %v817 = vunpack.c.l.b16 %v749
        %v818 = vunpack.c.h.b16 %v749
        %v819 = vunpack.c.l.b16 %v750
        %v820 = vunpack.c.h.b16 %v750
        %v821 = vunpack.c.l.b16 %v751
        %v822 = vunpack.c.h.b16 %v751
        %v823 = vunpack.c.l.b16 %v752
        %v824 = vunpack.c.h.b16 %v752
        %v825 = vunpack.c.l.b16 %v753
        %v826 = vunpack.c.h.b16 %v753
        %v827 = vunpack.c.l.b16 %v754
        %v828 = vunpack.c.h.b16 %v754
        %v829 = vunpack.c.l.b16 %v755
        %v830 = vunpack.c.h.b16 %v755
        %v831 = vpack.c.b16 %v797, %v795
        %v832 = vpack.c.b16 %v798, %v796
        %v833 = vpack.c.b16 %v801, %v799
        %v834 = vpack.c.b16 %v802, %v800
        %v835 = vpack.c.b16 %v805, %v803
        %v836 = vpack.c.b16 %v806, %v804
        %v837 = vpack.c.b16 %v809, %v807
        %v838 = vpack.c.b16 %v810, %v808
        %v839 = vpack.c.b16 %v813, %v811
        %v840 = vpack.c.b16 %v814, %v812
        %v841 = vpack.c.b16 %v817, %v815
        %v842 = vpack.c.b16 %v818, %v816
        %v843 = vpack.c.b16 %v821, %v819
        %v844 = vpack.c.b16 %v822, %v820
        %v845 = vpack.c.b16 %v825, %v823
        %v846 = vpack.c.b16 %v826, %v824
        %v847 = vpack.c.b16 %v829, %v827
        %v848 = vpack.c.b16 %v830, %v828
        %vm867 = vcmask 130048
        %v869 = vsel %vm867, %v775, 0
        %871 = vmatprep.subr.bf16.mxu0 %v846
        %872 = vmatpush1.bf16.msra.mxu0 %v845
        %873 = vmatprep.subr.bf16.mxu0 %v844
        %874 = vmatpush1.bf16.msra.mxu0 %v843
        %875 = vmatprep.subr.bf16.mxu0 %v842
        %876 = vmatpush1.bf16.msra.mxu0 %v841
        %877 = vmatprep.subr.bf16.mxu0 %v840
        %878 = vmatpush1.bf16.msra.mxu0 %v839
        %879 = vmatprep.subr.bf16.mxu0 %v838
        %880 = vmatpush1.bf16.msra.mxu0 %v837
        %881 = vmatprep.subr.bf16.mxu0 %v836
        %882 = vmatpush1.bf16.msra.mxu0 %v835
        %883 = vmatprep.subr.bf16.mxu0 %v834
        %884 = vmatpush1.bf16.msra.mxu0 %v833
        %885 = vmatprep.subr.bf16.mxu0 %v832
        %886 = vmatpush1.bf16.msra.mxu0 %v831
        %887 = vmatprep.subr.bf16.mxu0 0
        %888 = vmatpush2.bf16.msra.mxu0 0
        %889 = vmatprep.subr.bf16.mxu0 0
        %890 = vmatpush2.bf16.msra.mxu0 0
        %891 = vmatprep.subr.bf16.mxu0 0
        %892 = vmatpush2.bf16.msra.mxu0 0
        %893 = vmatprep.subr.bf16.mxu0 0
        %894 = vmatpush2.bf16.msra.mxu0 0
        %895 = vmatprep.subr.bf16.mxu0 0
        %896 = vmatpush2.bf16.msra.mxu0 0
        %897 = vmatprep.subr.bf16.mxu0 0
        %898 = vmatpush2.bf16.msra.mxu0 0
        %899 = vmatprep.subr.bf16.mxu0 0
        %900 = vmatpush2.bf16.msra.mxu0 0
        %901 = vmatprep.subr.bf16.mxu0 %v848
        %902 = vmatpush2.bf16.msra.mxu0 %v847
        %903 = vmatprep.mubr.bf16.mxu0 %v869
        %904 = vmatmul.mubr.bf16.gmra.mxu0 %v774
        %v905 = vpop.f32.mrf.mxu0
        %v906 = vadd.f32 %v761, %v905
        %v907 = vpop.f32.mrf.mxu0
        %v908 = vadd.f32 %v761, %v907
        %v909 = vpop.f32.mrf.mxu0
        %v910 = vadd.f32 %v766, %v909
        %v911 = vpop.f32.mrf.mxu0
        %v912 = vadd.f32 %v766, %v911
        %913 = vdwg.mxu0
        %v914 = vmax.f32 %v906, 0.0
        %v915 = vmax.f32 %v908, 0.0
        %v916 = vmax.f32 %v910, 0.0
        %v917 = vmax.f32 %v912, 0.0
        %v918 = vpack.c.bf16 %v916, %v914
        %v919 = vpack.c.bf16 %v917, %v915
        %v920 = vld [vmem:[#allocation8] sm:$0xf]
        %v921 = vld [vmem:[%s6] sm:$0xff]
        %923 = vset.pattern.permute.xlu0 0
        %924 = vperm.xlu0 %923, %v921
        %v925 = vpop.permute.xlu0 %924
        %v928 = vsel %vm867, %v920, 0
        %930 = vmatprep.subr.bf16.mxu0 0
        %931 = vmatpush1.bf16.msra.mxu0 0
        %932 = vmatprep.subr.bf16.mxu0 0
        %933 = vmatpush1.bf16.msra.mxu0 0
        %934 = vmatprep.subr.bf16.mxu0 0
        %935 = vmatpush1.bf16.msra.mxu0 0
        %936 = vmatprep.subr.bf16.mxu0 0
        %937 = vmatpush1.bf16.msra.mxu0 0
        %938 = vmatprep.subr.bf16.mxu0 0
        %939 = vmatpush1.bf16.msra.mxu0 0
        %940 = vmatprep.subr.bf16.mxu0 0
        %941 = vmatpush1.bf16.msra.mxu0 0
        %942 = vmatprep.subr.bf16.mxu0 0
        %943 = vmatpush1.bf16.msra.mxu0 0
        %944 = vmatprep.subr.bf16.mxu0 %v919
        %945 = vmatpush1.bf16.msra.mxu0 %v918
        %946 = vmatprep.subr.bf16.mxu0 0
        %947 = vmatpush2.bf16.msra.mxu0 0
        %948 = vmatprep.subr.bf16.mxu0 0
        %949 = vmatpush2.bf16.msra.mxu0 0
        %950 = vmatprep.subr.bf16.mxu0 0
        %951 = vmatpush2.bf16.msra.mxu0 0
        %952 = vmatprep.subr.bf16.mxu0 0
        %953 = vmatpush2.bf16.msra.mxu0 0
        %954 = vmatprep.subr.bf16.mxu0 0
        %955 = vmatpush2.bf16.msra.mxu0 0
        %956 = vmatprep.subr.bf16.mxu0 0
        %957 = vmatpush2.bf16.msra.mxu0 0
        %958 = vmatprep.subr.bf16.mxu0 0
        %959 = vmatpush2.bf16.msra.mxu0 0
        %960 = vmatprep.subr.bf16.mxu0 0
        %961 = vmatpush2.bf16.msra.mxu0 0
        %962 = vmatprep.mubr.bf16.mxu0 0
        %963 = vmatmul.mubr.bf16.gmra.mxu0 %v928
        %v964 = vpop.f32.mrf.mxu0
        %v965 = vadd.f32 %v925, %v964
        %v966 = vpop.f32.mrf.mxu0
        %v967 = vadd.f32 %v925, %v966
        %v968 = vpop.f32.mrf.mxu0
        %v969 = vpop.f32.mrf.mxu0
        %970 = vdwg.mxu0
        %971 = vrot.lane.b32.xlu0 %v965, 17
        %v972 = vpop.permute.xlu0 %971
        %973 = vrot.lane.b32.xlu0 %v967, 17
        %v974 = vpop.permute.xlu0 %973
        %v975 = vsel %vm438, %v972, %v974
        %v976 = vsel %vm438, %v974, %v972
        %v977 = vsel %vm445, %v976, 0.0
        %v978 = vsel %vm446, %v975, 0.0
        %979 = vrot.lane.b32.xlu0 %v965, 16
        %v980 = vpop.permute.xlu0 %979
        %981 = vrot.lane.b32.xlu0 %v967, 16
        %v982 = vpop.permute.xlu0 %981
        %v983 = vsel %vm453, %v980, %v982
        %v984 = vsel %vm453, %v982, %v980
        %v985 = vsel %vm441, %v984, 0.0
        %v986 = vsel %vm442, %v983, 0.0
        %v987 = vpack.c.bf16 %v985, %v977
        %v988 = vpack.c.bf16 %v986, %v978
        %v991 = vunpack.c.l.b16 %v987
        %v992 = vunpack.c.l.b16 %v988
        %v993 = vunpack.c.h.b16 %v987
        %v994 = vunpack.c.h.b16 %v988
        %v995 = vpack.c.b16 %v992, %v991
        %v996 = vpack.c.b16 %v994, %v993
        %999 = vst [vmem:[#allocation2] sm:$0xff] %v995
        %1000 = vst [vmem:[#allocation2 + $0x8] sm:$0xff] %v996
        %1001 = vrot.lane.b32.xlu0 %v965, 15
        %v1002 = vpop.permute.xlu0 %1001
        %1003 = vrot.lane.b32.xlu0 %v967, 15
        %v1004 = vpop.permute.xlu0 %1003
        %v1005 = vsel %vm476, %v1002, %v1004
        %v1006 = vsel %vm476, %v1004, %v1002
        %v1007 = vsel %vm481, %v1006, 0.0
        %v1008 = vsel %vm482, %v1005, 0.0
        %1009 = vrot.lane.b32.xlu0 %v965, 1
        %v1010 = vpop.permute.xlu0 %1009
        %1011 = vrot.lane.b32.xlu0 %v967, 1
        %v1012 = vpop.permute.xlu0 %1011
        %v1013 = vsel %vm489, %v1010, %v1012
        %v1014 = vsel %vm489, %v1012, %v1010
        %v1015 = vsel %vm443, %v1014, 0.0
        %v1016 = vsel %vm444, %v1013, 0.0
        %v1017 = vpack.c.bf16 %v1015, %v1007
        %v1018 = vpack.c.bf16 %v1016, %v1008
        %v1021 = vunpack.c.l.b16 %v1017
        %v1022 = vunpack.c.l.b16 %v1018
        %v1023 = vunpack.c.h.b16 %v1017
        %v1024 = vunpack.c.h.b16 %v1018
        %v1025 = vpack.c.b16 %v1022, %v1021
        %v1026 = vpack.c.b16 %v1024, %v1023
        %1029 = vst [vmem:[#allocation2 + $0x10] sm:$0xff] %v1025
        %1030 = vst [vmem:[#allocation2 + $0x18] sm:$0xff] %v1026
        %1031 = vrot.lane.b32.xlu0 %v965, 127
        %v1032 = vpop.permute.xlu0 %1031
        %1033 = vrot.lane.b32.xlu0 %v967, 127
        %v1034 = vpop.permute.xlu0 %1033
        %v1035 = vsel %vm512, %v1032, %v1034
        %v1036 = vsel %vm512, %v1034, %v1032
        %v1037 = vsel %vm479, %v1035, 0.0
        %v1038 = vsel %vm480, %v1036, 0.0
        %v1039 = vpack.c.bf16 %v1037, %v965
        %v1040 = vpack.c.bf16 %v1038, %v967
        %v1043 = vunpack.c.l.b16 %v1039
        %v1044 = vunpack.c.l.b16 %v1040
        %v1045 = vunpack.c.h.b16 %v1039
        %v1046 = vunpack.c.h.b16 %v1040
        %v1047 = vpack.c.b16 %v1044, %v1043
        %v1048 = vpack.c.b16 %v1046, %v1045
        %1051 = vst [vmem:[#allocation2 + $0x20] sm:$0xff] %v1047
        %1052 = vst [vmem:[#allocation2 + $0x28] sm:$0xff] %v1048
        %1053 = vrot.lane.b32.xlu0 %v965, 113
        %v1054 = vpop.permute.xlu0 %1053
        %1055 = vrot.lane.b32.xlu0 %v967, 113
        %v1056 = vpop.permute.xlu0 %1055
        %v1057 = vsel %vm535, %v1054, %v1056
        %v1058 = vsel %vm535, %v1056, %v1054
        %v1059 = vsel %vm540, %v1057, 0.0
        %v1060 = vsel %vm541, %v1058, 0.0
        %1061 = vrot.lane.b32.xlu0 %v965, 112
        %v1062 = vpop.permute.xlu0 %1061
        %1063 = vrot.lane.b32.xlu0 %v967, 112
        %v1064 = vpop.permute.xlu0 %1063
        %v1065 = vsel %vm548, %v1062, %v1064
        %v1066 = vsel %vm548, %v1064, %v1062
        %v1067 = vsel %vm538, %v1065, 0.0
        %v1068 = vsel %vm539, %v1066, 0.0
        %v1069 = vpack.c.bf16 %v1067, %v1059
        %v1070 = vpack.c.bf16 %v1068, %v1060
        %v1073 = vunpack.c.l.b16 %v1069
        %v1074 = vunpack.c.l.b16 %v1070
        %v1075 = vunpack.c.h.b16 %v1069
        %v1076 = vunpack.c.h.b16 %v1070
        %v1077 = vpack.c.b16 %v1074, %v1073
        %v1078 = vpack.c.b16 %v1076, %v1075
        %1081 = vst [vmem:[#allocation2 + $0x30] sm:$0xff] %v1077
        %1082 = vst [vmem:[#allocation2 + $0x38] sm:$0xff] %v1078
        %1083 = vrot.lane.b32.xlu0 %v965, 111
        %v1084 = vpop.permute.xlu0 %1083
        %1085 = vrot.lane.b32.xlu0 %v967, 111
        %v1086 = vpop.permute.xlu0 %1085
        %v1087 = vsel %vm571, %v1084, %v1086
        %v1088 = vsel %vm571, %v1086, %v1084
        %v1089 = vsel %vm574, %v1087, 0.0
        %v1090 = vsel %vm575, %v1088, 0.0
        %1091 = vrot.lane.b32.xlu0 %v965, 34
        %v1092 = vpop.permute.xlu0 %1091
        %1093 = vrot.lane.b32.xlu0 %v967, 34
        %v1094 = vpop.permute.xlu0 %1093
        %v1095 = vsel %vm582, %v1092, %v1094
        %v1096 = vsel %vm582, %v1094, %v1092
        %v1097 = vsel %vm589, %v1096, 0.0
        %v1098 = vsel %vm590, %v1095, 0.0
        %v1099 = vpack.c.bf16 %v1097, %v1089
        %v1100 = vpack.c.bf16 %v1098, %v1090
        %v1103 = vunpack.c.l.b16 %v1099
        %v1104 = vunpack.c.l.b16 %v1100
        %v1105 = vunpack.c.h.b16 %v1099
        %v1106 = vunpack.c.h.b16 %v1100
        %v1107 = vpack.c.b16 %v1104, %v1103
        %v1108 = vpack.c.b16 %v1106, %v1105
        %1111 = vst [vmem:[#allocation2 + $0x40] sm:$0xff] %v1107
        %1112 = vst [vmem:[#allocation2 + $0x48] sm:$0xff] %v1108
        %1113 = vrot.lane.b32.xlu0 %v965, 32
        %v1114 = vpop.permute.xlu0 %1113
        %1115 = vrot.lane.b32.xlu0 %v967, 32
        %v1116 = vpop.permute.xlu0 %1115
        %v1117 = vsel %vm611, %v1114, %v1116
        %v1118 = vsel %vm611, %v1116, %v1114
        %v1119 = vsel %vm585, %v1118, 0.0
        %v1120 = vsel %vm586, %v1117, 0.0
        %1121 = vrot.lane.b32.xlu0 %v965, 30
        %v1122 = vpop.permute.xlu0 %1121
        %1123 = vrot.lane.b32.xlu0 %v967, 30
        %v1124 = vpop.permute.xlu0 %1123
        %v1125 = vsel %vm620, %v1122, %v1124
        %v1126 = vsel %vm620, %v1124, %v1122
        %v1127 = vsel %vm625, %v1126, 0.0
        %v1128 = vsel %vm626, %v1125, 0.0
        %v1129 = vpack.c.bf16 %v1127, %v1119
        %v1130 = vpack.c.bf16 %v1128, %v1120
        %v1133 = vunpack.c.l.b16 %v1129
        %v1134 = vunpack.c.l.b16 %v1130
        %v1135 = vunpack.c.h.b16 %v1129
        %v1136 = vunpack.c.h.b16 %v1130
        %v1137 = vpack.c.b16 %v1134, %v1133
        %v1138 = vpack.c.b16 %v1136, %v1135
        %1141 = vst [vmem:[#allocation2 + $0x50] sm:$0xff] %v1137
        %1142 = vst [vmem:[#allocation2 + $0x58] sm:$0xff] %v1138
        %1143 = vrot.lane.b32.xlu0 %v965, 2
        %v1144 = vpop.permute.xlu0 %1143
        %1145 = vrot.lane.b32.xlu0 %v967, 2
        %v1146 = vpop.permute.xlu0 %1145
        %v1147 = vsel %vm647, %v1144, %v1146
        %v1148 = vsel %vm647, %v1146, %v1144
        %v1149 = vsel %vm587, %v1148, 0.0
        %v1150 = vsel %vm588, %v1147, 0.0
        %v1151 = vpack.c.bf16 %v965, %v1149
        %v1152 = vpack.c.bf16 %v967, %v1150
        %v1155 = vunpack.c.l.b16 %v1151
        %v1156 = vunpack.c.l.b16 %v1152
        %v1157 = vunpack.c.h.b16 %v1151
        %v1158 = vunpack.c.h.b16 %v1152
        %v1159 = vpack.c.b16 %v1156, %v1155
        %v1160 = vpack.c.b16 %v1158, %v1157
        %1163 = vst [vmem:[#allocation2 + $0x60] sm:$0xff] %v1159
        %1164 = vst [vmem:[#allocation2 + $0x68] sm:$0xff] %v1160
        %1165 = vrot.lane.b32.xlu0 %v965, 126
        %v1166 = vpop.permute.xlu0 %1165
        %1167 = vrot.lane.b32.xlu0 %v967, 126
        %v1168 = vpop.permute.xlu0 %1167
        %v1169 = vsel %vm670, %v1166, %v1168
        %v1170 = vsel %vm670, %v1168, %v1166
        %v1171 = vsel %vm623, %v1169, 0.0
        %v1172 = vsel %vm624, %v1170, 0.0
        %1173 = vrot.lane.b32.xlu0 %v965, 98
        %v1174 = vpop.permute.xlu0 %1173
        %1175 = vrot.lane.b32.xlu0 %v967, 98
        %v1176 = vpop.permute.xlu0 %1175
        %v1177 = vsel %vm679, %v1174, %v1176
        %v1178 = vsel %vm679, %v1176, %v1174
        %v1179 = vsel %vm684, %v1177, 0.0
        %v1180 = vsel %vm685, %v1178, 0.0
        %v1181 = vpack.c.bf16 %v1179, %v1171
        %v1182 = vpack.c.bf16 %v1180, %v1172
        %v1185 = vunpack.c.l.b16 %v1181
        %v1186 = vunpack.c.l.b16 %v1182
        %v1187 = vunpack.c.h.b16 %v1181
        %v1188 = vunpack.c.h.b16 %v1182
        %v1189 = vpack.c.b16 %v1186, %v1185
        %v1190 = vpack.c.b16 %v1188, %v1187
        %1193 = vst [vmem:[#allocation2 + $0x70] sm:$0xff] %v1189
        %1194 = vst [vmem:[#allocation2 + $0x78] sm:$0xff] %v1190
        %1195 = vrot.lane.b32.xlu0 %v965, 96
        %v1196 = vpop.permute.xlu0 %1195
        %1197 = vrot.lane.b32.xlu0 %v967, 96
        %v1198 = vpop.permute.xlu0 %1197
        %v1199 = vsel %vm706, %v1196, %v1198
        %v1200 = vsel %vm706, %v1198, %v1196
        %v1201 = vsel %vm682, %v1199, 0.0
        %v1202 = vsel %vm683, %v1200, 0.0
        %1203 = vrot.lane.b32.xlu0 %v965, 94
        %v1204 = vpop.permute.xlu0 %1203
        %1205 = vrot.lane.b32.xlu0 %v967, 94
        %v1206 = vpop.permute.xlu0 %1205
        %v1207 = vsel %vm715, %v1204, %v1206
        %v1208 = vsel %vm715, %v1206, %v1204
        %v1209 = vsel %vm718, %v1207, 0.0
        %v1210 = vsel %vm719, %v1208, 0.0
        %v1211 = vpack.c.bf16 %v1209, %v1201
        %v1212 = vpack.c.bf16 %v1210, %v1202
        %v1215 = vunpack.c.l.b16 %v1211
        %v1216 = vunpack.c.l.b16 %v1212
        %v1217 = vunpack.c.h.b16 %v1211
        %v1218 = vunpack.c.h.b16 %v1212
        %v1219 = vpack.c.b16 %v1216, %v1215
        %v1220 = vpack.c.b16 %v1218, %v1217
        %1223 = vst [vmem:[#allocation2 + $0x80] sm:$0xff] %v1219
        %1224 = vst [vmem:[#allocation2 + $0x88] sm:$0xff] %v1220
        %v1225 = vld [vmem:[%s7] sm:$0xff]
        %v1226 = vld [vmem:[%s7 + $0x8] sm:$0xff]
        %v1227 = vld [vmem:[#allocation2] sm:$0xff]
        %v1228 = vld [vmem:[#allocation2 + $0x8] sm:$0xff]
        %v1229 = vld [vmem:[#allocation2 + $0x10] sm:$0xff]
        %v1230 = vld [vmem:[#allocation2 + $0x18] sm:$0xff]
        %v1231 = vld [vmem:[#allocation2 + $0x20] sm:$0xff]
        %v1232 = vld [vmem:[#allocation2 + $0x28] sm:$0xff]
        %v1233 = vld [vmem:[#allocation2 + $0x30] sm:$0xff]
        %v1234 = vld [vmem:[#allocation2 + $0x38] sm:$0xff]
        %v1235 = vld [vmem:[#allocation2 + $0x40] sm:$0xff]
        %v1236 = vld [vmem:[#allocation2 + $0x48] sm:$0xff]
        %v1237 = vld [vmem:[#allocation2 + $0x50] sm:$0xff]
        %v1238 = vld [vmem:[#allocation2 + $0x58] sm:$0xff]
        %v1239 = vld [vmem:[#allocation2 + $0x60] sm:$0xff]
        %v1240 = vld [vmem:[#allocation2 + $0x68] sm:$0xff]
        %v1241 = vld [vmem:[#allocation2 + $0x70] sm:$0xff]
        %v1242 = vld [vmem:[#allocation2 + $0x78] sm:$0xff]
        %v1243 = vld [vmem:[#allocation2 + $0x80] sm:$0xff]
        %v1244 = vld [vmem:[#allocation2 + $0x88] sm:$0xff]
        %v1245 = vld [vmem:[%s8] sm:$0xff]
        %v1246 = vld [vmem:[%s8 + $0x8] sm:$0xff]
        %1248 = vset.pattern.permute.xlu0 0
        %1249 = vperm.xlu0 %1248, %v1245
        %v1250 = vpop.permute.xlu0 %1249
        %1253 = vset.pattern.permute.xlu0 0
        %1254 = vperm.xlu0 %1253, %v1246
        %v1255 = vpop.permute.xlu0 %1254
        %v1259 = vunpack.c.l.b16 %v1225
        %v1260 = vunpack.c.h.b16 %v1225
        %v1261 = vunpack.c.l.b16 %v1226
        %v1262 = vunpack.c.h.b16 %v1226
        %v1263 = vpack.c.b16 %v1261, %v1259
        %v1264 = vpack.c.b16 %v1262, %v1260
        %v1284 = vunpack.c.l.b16 %v1227
        %v1285 = vunpack.c.h.b16 %v1227
        %v1286 = vunpack.c.l.b16 %v1228
        %v1287 = vunpack.c.h.b16 %v1228
        %v1288 = vunpack.c.l.b16 %v1229
        %v1289 = vunpack.c.h.b16 %v1229
        %v1290 = vunpack.c.l.b16 %v1230
        %v1291 = vunpack.c.h.b16 %v1230
        %v1292 = vunpack.c.l.b16 %v1231
        %v1293 = vunpack.c.h.b16 %v1231
        %v1294 = vunpack.c.l.b16 %v1232
        %v1295 = vunpack.c.h.b16 %v1232
        %v1296 = vunpack.c.l.b16 %v1233
        %v1297 = vunpack.c.h.b16 %v1233
        %v1298 = vunpack.c.l.b16 %v1234
        %v1299 = vunpack.c.h.b16 %v1234
        %v1300 = vunpack.c.l.b16 %v1235
        %v1301 = vunpack.c.h.b16 %v1235
        %v1302 = vunpack.c.l.b16 %v1236
        %v1303 = vunpack.c.h.b16 %v1236
        %v1304 = vunpack.c.l.b16 %v1237
        %v1305 = vunpack.c.h.b16 %v1237
        %v1306 = vunpack.c.l.b16 %v1238
        %v1307 = vunpack.c.h.b16 %v1238
        %v1308 = vunpack.c.l.b16 %v1239
        %v1309 = vunpack.c.h.b16 %v1239
        %v1310 = vunpack.c.l.b16 %v1240
        %v1311 = vunpack.c.h.b16 %v1240
        %v1312 = vunpack.c.l.b16 %v1241
        %v1313 = vunpack.c.h.b16 %v1241
        %v1314 = vunpack.c.l.b16 %v1242
        %v1315 = vunpack.c.h.b16 %v1242
        %v1316 = vunpack.c.l.b16 %v1243
        %v1317 = vunpack.c.h.b16 %v1243
        %v1318 = vunpack.c.l.b16 %v1244
        %v1319 = vunpack.c.h.b16 %v1244
        %v1320 = vpack.c.b16 %v1286, %v1284
        %v1321 = vpack.c.b16 %v1287, %v1285
        %v1322 = vpack.c.b16 %v1290, %v1288
        %v1323 = vpack.c.b16 %v1291, %v1289
        %v1324 = vpack.c.b16 %v1294, %v1292
        %v1325 = vpack.c.b16 %v1295, %v1293
        %v1326 = vpack.c.b16 %v1298, %v1296
        %v1327 = vpack.c.b16 %v1299, %v1297
        %v1328 = vpack.c.b16 %v1302, %v1300
        %v1329 = vpack.c.b16 %v1303, %v1301
        %v1330 = vpack.c.b16 %v1306, %v1304
        %v1331 = vpack.c.b16 %v1307, %v1305
        %v1332 = vpack.c.b16 %v1310, %v1308
        %v1333 = vpack.c.b16 %v1311, %v1309
        %v1334 = vpack.c.b16 %v1314, %v1312
        %v1335 = vpack.c.b16 %v1315, %v1313
        %v1336 = vpack.c.b16 %v1318, %v1316
        %v1337 = vpack.c.b16 %v1319, %v1317
        %v1357 = vsel %vm867, %v1264, 0
        %1359 = vmatprep.subr.bf16.mxu0 %v1335
        %1360 = vmatpush1.bf16.msra.mxu0 %v1334
        %1361 = vmatprep.subr.bf16.mxu0 %v1333
        %1362 = vmatpush1.bf16.msra.mxu0 %v1332
        %1363 = vmatprep.subr.bf16.mxu0 %v1331
        %1364 = vmatpush1.bf16.msra.mxu0 %v1330
        %1365 = vmatprep.subr.bf16.mxu0 %v1329
        %1366 = vmatpush1.bf16.msra.mxu0 %v1328
        %1367 = vmatprep.subr.bf16.mxu0 %v1327
        %1368 = vmatpush1.bf16.msra.mxu0 %v1326
        %1369 = vmatprep.subr.bf16.mxu0 %v1325
        %1370 = vmatpush1.bf16.msra.mxu0 %v1324
        %1371 = vmatprep.subr.bf16.mxu0 %v1323
        %1372 = vmatpush1.bf16.msra.mxu0 %v1322
        %1373 = vmatprep.subr.bf16.mxu0 %v1321
        %1374 = vmatpush1.bf16.msra.mxu0 %v1320
        %1375 = vmatprep.subr.bf16.mxu0 0
        %1376 = vmatpush2.bf16.msra.mxu0 0
        %1377 = vmatprep.subr.bf16.mxu0 0
        %1378 = vmatpush2.bf16.msra.mxu0 0
        %1379 = vmatprep.subr.bf16.mxu0 0
        %1380 = vmatpush2.bf16.msra.mxu0 0
        %1381 = vmatprep.subr.bf16.mxu0 0
        %1382 = vmatpush2.bf16.msra.mxu0 0
        %1383 = vmatprep.subr.bf16.mxu0 0
        %1384 = vmatpush2.bf16.msra.mxu0 0
        %1385 = vmatprep.subr.bf16.mxu0 0
        %1386 = vmatpush2.bf16.msra.mxu0 0
        %1387 = vmatprep.subr.bf16.mxu0 0
        %1388 = vmatpush2.bf16.msra.mxu0 0
        %1389 = vmatprep.subr.bf16.mxu0 %v1337
        %1390 = vmatpush2.bf16.msra.mxu0 %v1336
        %1391 = vmatprep.mubr.bf16.mxu0 %v1357
        %1392 = vmatmul.mubr.bf16.gmra.mxu0 %v1263
        %v1393 = vpop.f32.mrf.mxu0
        %v1394 = vadd.f32 %v1250, %v1393
        %v1395 = vpop.f32.mrf.mxu0
        %v1396 = vadd.f32 %v1250, %v1395
        %v1397 = vpop.f32.mrf.mxu0
        %v1398 = vadd.f32 %v1255, %v1397
        %v1399 = vpop.f32.mrf.mxu0
        %v1400 = vadd.f32 %v1255, %v1399
        %1401 = vdwg.mxu0
        %v1402 = vmax.f32 %v1394, 0.0
        %v1403 = vmax.f32 %v1396, 0.0
        %v1404 = vmax.f32 %v1398, 0.0
        %v1405 = vmax.f32 %v1400, 0.0
        %v1406 = vpack.c.bf16 %v1404, %v1402
        %v1407 = vpack.c.bf16 %v1405, %v1403
        %v1408 = vld [vmem:[%s9] sm:$0xf]
        %v1409 = vld [vmem:[%s10] sm:$0xff]
        %1411 = vset.pattern.permute.xlu0 0
        %1412 = vperm.xlu0 %1411, %v1409
        %v1413 = vpop.permute.xlu0 %1412
        %v1416 = vsel %vm867, %v1408, 0
        %1418 = vmatprep.subr.bf16.mxu0 0
        %1419 = vmatpush1.bf16.msra.mxu0 0
        %1420 = vmatprep.subr.bf16.mxu0 0
        %1421 = vmatpush1.bf16.msra.mxu0 0
        %1422 = vmatprep.subr.bf16.mxu0 0
        %1423 = vmatpush1.bf16.msra.mxu0 0
        %1424 = vmatprep.subr.bf16.mxu0 0
        %1425 = vmatpush1.bf16.msra.mxu0 0
        %1426 = vmatprep.subr.bf16.mxu0 0
        %1427 = vmatpush1.bf16.msra.mxu0 0
        %1428 = vmatprep.subr.bf16.mxu0 0
        %1429 = vmatpush1.bf16.msra.mxu0 0
        %1430 = vmatprep.subr.bf16.mxu0 0
        %1431 = vmatpush1.bf16.msra.mxu0 0
        %1432 = vmatprep.subr.bf16.mxu0 %v1407
        %1433 = vmatpush1.bf16.msra.mxu0 %v1406
        %1434 = vmatprep.subr.bf16.mxu0 0
        %1435 = vmatpush2.bf16.msra.mxu0 0
        %1436 = vmatprep.subr.bf16.mxu0 0
        %1437 = vmatpush2.bf16.msra.mxu0 0
        %1438 = vmatprep.subr.bf16.mxu0 0
        %1439 = vmatpush2.bf16.msra.mxu0 0
        %1440 = vmatprep.subr.bf16.mxu0 0
        %1441 = vmatpush2.bf16.msra.mxu0 0
        %1442 = vmatprep.subr.bf16.mxu0 0
        %1443 = vmatpush2.bf16.msra.mxu0 0
        %1444 = vmatprep.subr.bf16.mxu0 0
        %1445 = vmatpush2.bf16.msra.mxu0 0
        %1446 = vmatprep.subr.bf16.mxu0 0
        %1447 = vmatpush2.bf16.msra.mxu0 0
        %1448 = vmatprep.subr.bf16.mxu0 0
        %1449 = vmatpush2.bf16.msra.mxu0 0
        %1450 = vmatprep.mubr.bf16.mxu0 0
        %1451 = vmatmul.mubr.bf16.gmra.mxu0 %v1416
        %v1452 = vpop.f32.mrf.mxu0
        %v1453 = vadd.f32 %v1413, %v1452
        %v1454 = vpop.f32.mrf.mxu0
        %v1455 = vadd.f32 %v1413, %v1454
        %v1456 = vpop.f32.mrf.mxu0
        %v1457 = vpop.f32.mrf.mxu0
        %1458 = vdwg.mxu0
        %v1459 = vadd.f32 %v1453, %v426
        %v1460 = vadd.f32 %v1455, %v427
        %1461 = vst [vmem:[%s419] sm:$0xff] %v1459
        %1462 = vst [vmem:[%s419 + $0x8] sm:$0xff] %v1460
        %s1463 = sand.u32 %s271, 1
        %s1464 = scalar_lea.sflag [#allocation5], %s1463
        %s1465 = sand.u32 %s271, 1
        %s1466 = smul.addr %s1465, 16
        %s1467 = scalar_lea.vmem [#allocation9], %s1466
        // Predicated region
        $region77: #{tpu_custom_call.1} parent=63 // pred_check
          %p1468 = pneg %p281
        $region78: #{tpu_custom_call.1} parent=63 // pred_check_branch
          %1470 = sbr.rel (%p1468) target = $region80
        $region79: #{tpu_custom_call.1} parent=63 // pred_region
          %s1472 = ssub.s32 256, 256
          %1473 = vsyncadd %s1464, %s1472
          %s1474 = smul.addr %s27, 2
          %s1475 = smul.addr %s1474, 128
          %s1476 = scalar_lea.hbm %s11, %s1475
          %s1478 = sshll.u32 %s1467, 4
          %s1479 = int_to_ptr.vmem [resolvable:$true] %s1478
          %1481 = dma.vmem_to_hbm [thread:$0]  %s1479, 256, %s1476, %s1464
        $region80: #{tpu_custom_call.1} parent=63 // pred_fallthru
          _
      $region64: #{tpu_custom_call.1} parent=5 // pred_fallthru
        _
      %p1482 = scmp.le.s32.totalorder 2, %s22
      // Predicated region
      $region81: #{tpu_custom_call.1} parent=5 // pred_check
        %p1483 = pneg %p1482
      $region82: #{tpu_custom_call.1} parent=5 // pred_check_branch
        %1485 = sbr.rel (%p1483) target = $region84
      $region83: #{tpu_custom_call.1} parent=5 // pred_region
        %s1486 = ssub.s32 %s22, 2
        // Predicated region
        $region85: #{tpu_custom_call.1} parent=83 // pred_check
          %p1487 = pneg %p287
        $region86: #{tpu_custom_call.1} parent=83 // pred_check_branch
          %1489 = sbr.rel (%p1487) target = $region88
        $region87: #{tpu_custom_call.1} parent=83 // pred_region
          %s1490 = sand.u32 %s272, 1
          %s1491 = scalar_lea.sflag [#allocation5], %s1490
          %s1492 = sand.u32 %s272, 1
          %s1493 = smul.addr %s1492, 16
          %s1494 = scalar_lea.vmem [#allocation9], %s1493
          %1495 = dma.done %s1491, 256
        $region88: #{tpu_custom_call.1} parent=83 // pred_fallthru
          _
      $region84: #{tpu_custom_call.1} parent=5 // pred_fallthru
        _
    $region6: #{tpu_custom_call.1} parent=1 // loop_footer
      %s26 = sadd.s32 1, %s22
    $region7: #{tpu_custom_call.1} parent=1 // loop_footer_branch
      %21 = sbr.rel target = $region3
    $region8: #{tpu_custom_call.1} parent=1 // loop_exit
      _
    %1496 = vsyncpa [#allocation4], 1
    %s1497 = scalar_lea.sflag [#allocation4], 1
    %1498 = vsyncpa %s1497, 1
    %1499 = vsyncpa [#allocation7], 1
    %1500 = vsyncpa [#allocation5], 1
    %s1501 = scalar_lea.sflag [#allocation5], 1
    %1502 = vsyncpa %s1501, 1

</llo_original>
